<compile_context>
chip_gen: v7x
topology: tpu7x:2x2x1
jax: 0.10.0
libtpu: 0.0.40
codegen_flags: <defaults>
</compile_context>

<pallas_src>
import functools

import jax
import jax.numpy as jnp
import numpy as np
from jax.experimental import pallas as pl
from jax.experimental.pallas import tpu as pltpu


def _round_up(n, m):
    return (n + m - 1) // m * m


def _mib1_kernel(xp_ref, w_in_ref, w_dw_ref, w_out_ref, o_ref, hid_ref,
                 *, H, Wp, Ch):
    """Fused project_in -> depthwise 3x3 -> gate -> project_out for one image.

    xp_ref : (NP_pad, Cin)  bf16  zero-padded input pixels, channels-last,
                                  spatial dims flattened row-major with width Wp
    w_in   : (Cin, 2*Ch)    bf16  project_in weight (torch weight.T)
    w_dw   : (9, 2*Ch)      f32   depthwise taps (dh*3+dw, channel)
    w_out  : (2*Ch, Cout)   bf16  project_out weight (torch weight.T)
    o_ref  : (H*Wp, Cout)   f32   output rows j = h*Wp + w (cols w>=W are junk)
    hid_ref: (NP_pad, 2*Ch) f32   VMEM scratch: projected padded activations
    """
    C2 = 2 * Ch
    NV = H * Wp                       # rows carrying the depthwise/gate output

    # project_in for every padded pixel: one bf16 MXU matmul, f32 accumulation.
    hid_ref[...] = jnp.dot(xp_ref[...], w_in_ref[...],
                           preferred_element_type=jnp.float32)

    # Depthwise 3x3 with padding=1.  Halo rows/cols of hid are exactly zero
    # (zero-padded input, bias-free projection), so the conv is 9 shifted
    # whole-slab FMAs.  dh*Wp offsets are sublane-aligned (Wp % 8 == 0); tap
    # rows are loaded once each (9 broadcasts total, hoisted out of any loop).
    w_dw = w_dw_ref[...]                                   # (9, C2) f32
    acc = hid_ref[0:NV, :] * w_dw[0:1, :]                  # tap (dh=0, dw=0)
    for t in range(1, 9):
        dh, dw = divmod(t, 3)
        off = dh * Wp + dw
        acc = acc + hid_ref[off:off + NV, :] * w_dw[t:t + 1, :]

    # Gate g = cat([sigmoid(a)*b, sigmoid(b)*a]): sigmoid over the full slab
    # (single EUP pass), cross-half products, then ONE K=C2 output matmul.
    s = 1.0 / (1.0 + jnp.exp(-acc))                        # exact sigmoid, f32
    a = acc[:, :Ch]
    b = acc[:, Ch:]
    g = jnp.concatenate([s[:, :Ch] * b, s[:, Ch:] * a], axis=-1)
    o_ref[...] = jnp.dot(g.astype(jnp.bfloat16), w_out_ref[...],
                         preferred_element_type=jnp.float32)


def mib1_forward(x1, x2, x3, x4, params):
    """Mirrors MIB1.forward(x1, x2, x3, x4); inputs are NCHW (some may be None)."""
    xs = [t for t in (x1, x2, x3, x4) if t is not None]
    x = xs[0] if len(xs) == 1 else jnp.concatenate(xs, axis=1)
    B, Cin, H, W = x.shape

    w_in = params["w_in"]       # (Cin, 2*hidden)   == torch project_in weight.T
    w_dw = params["w_dw"]       # (9, 2*hidden)     taps indexed [dh*3+dw, ch]
    w_out = params["w_out"]     # (2*hidden, Cout)  == torch project_out weight.T
    C2 = w_in.shape[1]
    Ch = C2 // 2
    Cout = w_out.shape[1]
    assert w_in.shape[0] == Cin and w_dw.shape == (9, C2) and w_out.shape[0] == C2
    # NOTE: the zero-halo trick requires project_in to have NO bias (it doesn't).

    # NCHW -> NHWC, zero-pad one halo row/col, round padded width up to a
    # multiple of 8 (sublane alignment for the tap offsets), flatten spatial.
    Hp = H + 2
    Wp = _round_up(W + 2, 8)
    NP = Hp * Wp
    NV = H * Wp
    NP_pad = _round_up(NP + 2, 8)        # tap slices reach row NP + 1

    x_nhwc = jnp.transpose(x, (0, 2, 3, 1)).astype(jnp.float32)
    xp = jnp.pad(x_nhwc, ((0, 0), (1, 1), (1, Wp - W - 1), (0, 0)))
    xp2 = xp.reshape(B, NP, Cin)
    xp2 = jnp.pad(xp2, ((0, 0), (0, NP_pad - NP), (0, 0))).astype(jnp.bfloat16)

    w_in_b = jnp.asarray(w_in, jnp.bfloat16)
    w_dw_f = jnp.asarray(w_dw, jnp.float32)
    w_out_b = jnp.asarray(w_out, jnp.bfloat16)

    # Explicit VMEM budget: double-buffered in/out, hid scratch, gate temps.
    est = (2 * NP_pad * Cin * 2          # input double-buffer (bf16)
           + NP_pad * C2 * 4             # hid scratch (f32)
           + 8 * NV * C2 * 4             # depthwise/gate temporaries, headroom
           + 2 * NV * Cout * 4           # output double-buffer (f32)
           + 4 * (Cin * C2 + 9 * C2 + C2 * Cout) * 4)
    vmem_limit = int(min(max(est + (8 << 20), 32 << 20), 100 << 20))

    # TODO(synk): for large H*W, tile rows into strips with a 2-row halo
    # (grid=(B, n_strips), both "parallel") so hid fits the v7x 64 MiB VMEM
    # and odd/small batch sizes still keep both TensorCores busy; a lane-dense
    # (Cout padded to 128) output is a further store-side option for tiny Cout.
    kern = functools.partial(_mib1_kernel, H=H, Wp=Wp, Ch=Ch)
    out2 = pl.pallas_call(
        kern,
        out_shape=jax.ShapeDtypeStruct((B, NV, Cout), jnp.float32),
        grid=(B,),
        in_specs=[
            pl.BlockSpec((None, NP_pad, Cin), lambda b: (b, 0, 0)),
            pl.BlockSpec((Cin, C2), lambda b: (0, 0)),
            pl.BlockSpec((9, C2), lambda b: (0, 0)),
            pl.BlockSpec((C2, Cout), lambda b: (0, 0)),
        ],
        out_specs=pl.BlockSpec((None, NV, Cout), lambda b: (b, 0, 0)),
        scratch_shapes=[pltpu.VMEM((NP_pad, C2), jnp.float32)],
        compiler_params=pltpu.CompilerParams(
            dimension_semantics=("parallel",),
            vmem_limit_bytes=vmem_limit),
    )(xp2, w_in_b, w_dw_f, w_out_b)

    # (B, H*Wp, Cout): drop the right-pad columns, back to NCHW.
    y = out2.reshape(B, H, Wp, Cout)[:, :, :W, :]
    return jnp.transpose(y, (0, 3, 1, 2))


# ---------------------------------------------------------------------------
# Pure numpy reference (mirrors the PyTorch module exactly, float64)
# ---------------------------------------------------------------------------
def mib1_reference_np(x1, x2, x3, x4, params):
    xs = [np.asarray(t, np.float64) for t in (x1, x2, x3, x4) if t is not None]
    x = np.concatenate(xs, axis=1)
    w_in = np.asarray(params["w_in"], np.float64)
    w_dw = np.asarray(params["w_dw"], np.float64)
    w_out = np.asarray(params["w_out"], np.float64)
    B, Cin, H, W = x.shape
    C2 = w_in.shape[1]
    Ch = C2 // 2

    xh = x.transpose(0, 2, 3, 1)
    hid = xh @ w_in                                      # project_in (no bias)
    hp = np.pad(hid, ((0, 0), (1, 1), (1, 1), (0, 0)))   # torch pads in dwconv
    acc = np.zeros((B, H, W, C2), np.float64)
    for dh in range(3):
        for dw in range(3):
            acc += hp[:, dh:dh + H, dw:dw + W, :] * w_dw[dh * 3 + dw]
    a, b = acc[..., :Ch], acc[..., Ch:]
    sig = lambda t: 1.0 / (1.0 + np.exp(-t))
    g = np.concatenate([sig(a) * b, sig(b) * a], axis=-1)
    y = g @ w_out                                        # project_out (no bias)
    return y.transpose(0, 3, 1, 2)


if __name__ == "__main__":
    key = jax.random.PRNGKey(0)
    keys = jax.random.split(key, 8)

    # Four NCHW inputs of 4 channels each -> in_channel = 16 after concat.
    B, Cpart, H, W = 2, 4, 16, 16
    Cin = 4 * Cpart                 # in_channel
    Cout = Cin                      # out_channel
    hidden = 2 * Cin                # ffn_expansion_factor = 2
    C2 = 2 * hidden                 # dwconv / gate channel count

    x1 = jax.random.normal(keys[0], (B, Cpart, H, W), jnp.float32)
    x2 = jax.random.normal(keys[1], (B, Cpart, H, W), jnp.float32)
    x3 = jax.random.normal(keys[2], (B, Cpart, H, W), jnp.float32)
    x4 = jax.random.normal(keys[3], (B, Cpart, H, W), jnp.float32)

    params = {
        # project_in weight, stored as (Cin, 2*hidden) == torch weight.T
        "w_in":  0.2 * jax.random.normal(keys[4], (Cin, C2), jnp.float32),
        # depthwise 3x3 weight, stored as (9, 2*hidden): [dh*3+dw, channel]
        "w_dw":  0.2 * jax.random.normal(keys[5], (9, C2), jnp.float32),
        # project_out weight, stored as (2*hidden, Cout) == torch weight.T
        "w_out": 0.2 * jax.random.normal(keys[6], (C2, Cout), jnp.float32),
    }

    y = jax.block_until_ready(mib1_forward(x1, x2, x3, x4, params))
    assert y.shape == (B, Cout, H, W)

    y_ref = mib1_reference_np(x1, x2, x3, x4, params)
    err = np.abs(np.asarray(y, np.float64) - y_ref)
    tol = 5e-2 + 5e-2 * np.abs(y_ref)       # bf16 MXU operands -> %-level error
    if not bool(np.all(err <= tol)):
        raise SystemExit(f"mismatch vs reference: max abs err = {float(err.max())}")
    print("KERNEL_OK")
</pallas_src>

<mosaic_0001>
module attributes {stable_mosaic.version = 11 : i64} {
  func.func @_mib1_kernel(%arg0: i32, %arg1: memref<1x440x16xbf16, #tpu.memory_space<vmem>>, %arg2: memref<16x64xbf16, #tpu.memory_space<vmem>>, %arg3: memref<9x64xf32, #tpu.memory_space<vmem>>, %arg4: memref<64x16xbf16, #tpu.memory_space<vmem>>, %arg5: memref<1x384x16xf32, #tpu.memory_space<vmem>>, %arg6: memref<440x64xf32, #tpu.memory_space<vmem>>) attributes {dimension_semantics = [#tpu.dimension_semantics<parallel>], iteration_bounds = array<i64: 2>, scalar_prefetch = 0 : i64, scratch_operands = 1 : i64, tpu.core_type = #tpu.core_type<tc>, window_params = [{transform_indices = @transform_0, window_bounds = array<i64: 1, 440, 16>}, {pipeline_mode = #tpu.pipeline_mode<synchronous>, transform_indices = @transform_1, window_bounds = array<i64: 16, 64>}, {pipeline_mode = #tpu.pipeline_mode<synchronous>, transform_indices = @transform_2, window_bounds = array<i64: 9, 64>}, {pipeline_mode = #tpu.pipeline_mode<synchronous>, transform_indices = @transform_3, window_bounds = array<i64: 64, 16>}, {transform_indices = @transform_4, window_bounds = array<i64: 1, 384, 16>}]} {
    %c0 = arith.constant 0 : index
    %c0_0 = arith.constant 0 : index
    %c0_1 = arith.constant 0 : index
    %0 = vector.load %arg1[%c0, %c0_0, %c0_1] : memref<1x440x16xbf16, #tpu.memory_space<vmem>>, vector<1x440x16xbf16>
    %1 = vector.shape_cast %0 : vector<1x440x16xbf16> to vector<440x16xbf16>
    %c0_2 = arith.constant 0 : index
    %c0_3 = arith.constant 0 : index
    %2 = vector.load %arg2[%c0_2, %c0_3] : memref<16x64xbf16, #tpu.memory_space<vmem>>, vector<16x64xbf16>
    %cst = arith.constant dense<0.000000e+00> : vector<440x64xf32>
    %3 = tpu.matmul %1, %2, %cst {dimension_numbers = #tpu.dot_dimension_numbers<[1], [0], [0], [1], [0, 0, 1, 1], [], []>} : vector<440x16xbf16>, vector<16x64xbf16>, vector<440x64xf32> -> vector<440x64xf32>
    %c0_4 = arith.constant 0 : index
    %c0_5 = arith.constant 0 : index
    %4 = vector.load %arg6[%c0_4, %c0_5] : memref<440x64xf32, #tpu.memory_space<vmem>>, vector<440x64xf32>
    tpu.vector_store %arg6[%c0_4, %c0_5], %3 {strides = array<i32>} : memref<440x64xf32, #tpu.memory_space<vmem>>, vector<440x64xf32>,
    %c0_6 = arith.constant 0 : index
    %c0_7 = arith.constant 0 : index
    %5 = vector.load %arg3[%c0_6, %c0_7] : memref<9x64xf32, #tpu.memory_space<vmem>>, vector<9x64xf32>
    %c0_8 = arith.constant 0 : index
    %c0_9 = arith.constant 0 : index
    %6 = vector.load %arg6[%c0_8, %c0_9] : memref<440x64xf32, #tpu.memory_space<vmem>>, vector<384x64xf32>
    %7 = vector.extract_strided_slice %5 {offsets = [0, 0], sizes = [1, 64], strides = [1, 1]} : vector<9x64xf32> to vector<1x64xf32>
    %8 = vector.broadcast %7 : vector<1x64xf32> to vector<384x64xf32>
    %9 = arith.mulf %6, %8 : vector<384x64xf32>
    %c1 = arith.constant 1 : index
    %c0_10 = arith.constant 0 : index
    %10 = vector.load %arg6[%c1, %c0_10] : memref<440x64xf32, #tpu.memory_space<vmem>>, vector<384x64xf32>
    %11 = vector.extract_strided_slice %5 {offsets = [1, 0], sizes = [1, 64], strides = [1, 1]} : vector<9x64xf32> to vector<1x64xf32>
    %12 = vector.broadcast %11 : vector<1x64xf32> to vector<384x64xf32>
    %13 = arith.mulf %10, %12 : vector<384x64xf32>
    %14 = arith.addf %9, %13 : vector<384x64xf32>
    %c2 = arith.constant 2 : index
    %c0_11 = arith.constant 0 : index
    %15 = vector.load %arg6[%c2, %c0_11] : memref<440x64xf32, #tpu.memory_space<vmem>>, vector<384x64xf32>
    %16 = vector.extract_strided_slice %5 {offsets = [2, 0], sizes = [1, 64], strides = [1, 1]} : vector<9x64xf32> to vector<1x64xf32>
    %17 = vector.broadcast %16 : vector<1x64xf32> to vector<384x64xf32>
    %18 = arith.mulf %15, %17 : vector<384x64xf32>
    %19 = arith.addf %14, %18 : vector<384x64xf32>
    %c24 = arith.constant 24 : index
    %c0_12 = arith.constant 0 : index
    %20 = vector.load %arg6[%c24, %c0_12] : memref<440x64xf32, #tpu.memory_space<vmem>>, vector<384x64xf32>
    %21 = vector.extract_strided_slice %5 {offsets = [3, 0], sizes = [1, 64], strides = [1, 1]} : vector<9x64xf32> to vector<1x64xf32>
    %22 = vector.broadcast %21 : vector<1x64xf32> to vector<384x64xf32>
    %23 = arith.mulf %20, %22 : vector<384x64xf32>
    %24 = arith.addf %19, %23 : vector<384x64xf32>
    %c25 = arith.constant 25 : index
    %c0_13 = arith.constant 0 : index
    %25 = vector.load %arg6[%c25, %c0_13] : memref<440x64xf32, #tpu.memory_space<vmem>>, vector<384x64xf32>
    %26 = vector.extract_strided_slice %5 {offsets = [4, 0], sizes = [1, 64], strides = [1, 1]} : vector<9x64xf32> to vector<1x64xf32>
    %27 = vector.broadcast %26 : vector<1x64xf32> to vector<384x64xf32>
    %28 = arith.mulf %25, %27 : vector<384x64xf32>
    %29 = arith.addf %24, %28 : vector<384x64xf32>
    %c26 = arith.constant 26 : index
    %c0_14 = arith.constant 0 : index
    %30 = vector.load %arg6[%c26, %c0_14] : memref<440x64xf32, #tpu.memory_space<vmem>>, vector<384x64xf32>
    %31 = vector.extract_strided_slice %5 {offsets = [5, 0], sizes = [1, 64], strides = [1, 1]} : vector<9x64xf32> to vector<1x64xf32>
    %32 = vector.broadcast %31 : vector<1x64xf32> to vector<384x64xf32>
    %33 = arith.mulf %30, %32 : vector<384x64xf32>
    %34 = arith.addf %29, %33 : vector<384x64xf32>
    %c48 = arith.constant 48 : index
    %c0_15 = arith.constant 0 : index
    %35 = vector.load %arg6[%c48, %c0_15] : memref<440x64xf32, #tpu.memory_space<vmem>>, vector<384x64xf32>
    %36 = vector.extract_strided_slice %5 {offsets = [6, 0], sizes = [1, 64], strides = [1, 1]} : vector<9x64xf32> to vector<1x64xf32>
    %37 = vector.broadcast %36 : vector<1x64xf32> to vector<384x64xf32>
    %38 = arith.mulf %35, %37 : vector<384x64xf32>
    %39 = arith.addf %34, %38 : vector<384x64xf32>
    %c49 = arith.constant 49 : index
    %c0_16 = arith.constant 0 : index
    %40 = vector.load %arg6[%c49, %c0_16] : memref<440x64xf32, #tpu.memory_space<vmem>>, vector<384x64xf32>
    %41 = vector.extract_strided_slice %5 {offsets = [7, 0], sizes = [1, 64], strides = [1, 1]} : vector<9x64xf32> to vector<1x64xf32>
    %42 = vector.broadcast %41 : vector<1x64xf32> to vector<384x64xf32>
    %43 = arith.mulf %40, %42 : vector<384x64xf32>
    %44 = arith.addf %39, %43 : vector<384x64xf32>
    %c50 = arith.constant 50 : index
    %c0_17 = arith.constant 0 : index
    %45 = vector.load %arg6[%c50, %c0_17] : memref<440x64xf32, #tpu.memory_space<vmem>>, vector<384x64xf32>
    %46 = vector.extract_strided_slice %5 {offsets = [8, 0], sizes = [1, 64], strides = [1, 1]} : vector<9x64xf32> to vector<1x64xf32>
    %47 = vector.broadcast %46 : vector<1x64xf32> to vector<384x64xf32>
    %48 = arith.mulf %45, %47 : vector<384x64xf32>
    %49 = arith.addf %44, %48 : vector<384x64xf32>
    %cst_18 = arith.constant 0.000000e+00 : f32
    %50 = vector.broadcast %cst_18 : f32 to vector<384x64xf32>
    %51 = arith.subf %50, %49 : vector<384x64xf32>
    %52 = math.exp %51 : vector<384x64xf32>
    %cst_19 = arith.constant 1.000000e+00 : f32
    %53 = vector.broadcast %cst_19 : f32 to vector<384x64xf32>
    %54 = arith.addf %53, %52 : vector<384x64xf32>
    %cst_20 = arith.constant 1.000000e+00 : f32
    %55 = vector.broadcast %cst_20 : f32 to vector<384x64xf32>
    %56 = arith.divf %55, %54 : vector<384x64xf32>
    %57 = vector.extract_strided_slice %49 {offsets = [0, 0], sizes = [384, 32], strides = [1, 1]} : vector<384x64xf32> to vector<384x32xf32>
    %58 = vector.extract_strided_slice %49 {offsets = [0, 32], sizes = [384, 32], strides = [1, 1]} : vector<384x64xf32> to vector<384x32xf32>
    %59 = vector.extract_strided_slice %56 {offsets = [0, 0], sizes = [384, 32], strides = [1, 1]} : vector<384x64xf32> to vector<384x32xf32>
    %60 = arith.mulf %59, %58 : vector<384x32xf32>
    %61 = vector.extract_strided_slice %56 {offsets = [0, 32], sizes = [384, 32], strides = [1, 1]} : vector<384x64xf32> to vector<384x32xf32>
    %62 = arith.mulf %61, %57 : vector<384x32xf32>
    %63 = tpu.concatenate %60, %62 in 1 : vector<384x32xf32>, vector<384x32xf32> -> vector<384x64xf32>
    %64 = arith.truncf %63 : vector<384x64xf32> to vector<384x64xbf16>
    %c0_21 = arith.constant 0 : index
    %c0_22 = arith.constant 0 : index
    %65 = vector.load %arg4[%c0_21, %c0_22] : memref<64x16xbf16, #tpu.memory_space<vmem>>, vector<64x16xbf16>
    %cst_23 = arith.constant dense<0.000000e+00> : vector<384x16xf32>
    %66 = tpu.matmul %64, %65, %cst_23 {dimension_numbers = #tpu.dot_dimension_numbers<[1], [0], [0], [1], [0, 0, 1, 1], [], []>} : vector<384x64xbf16>, vector<64x16xbf16>, vector<384x16xf32> -> vector<384x16xf32>
    %c0_24 = arith.constant 0 : index
    %c0_25 = arith.constant 0 : index
    %c0_26 = arith.constant 0 : index
    %67 = vector.load %arg5[%c0_24, %c0_25, %c0_26] : memref<1x384x16xf32, #tpu.memory_space<vmem>>, vector<1x384x16xf32>
    %68 = vector.shape_cast %67 : vector<1x384x16xf32> to vector<384x16xf32>
    %69 = vector.shape_cast %66 : vector<384x16xf32> to vector<1x384x16xf32>
    tpu.vector_store %arg5[%c0_24, %c0_25, %c0_26], %69 {strides = array<i32>} : memref<1x384x16xf32, #tpu.memory_space<vmem>>, vector<1x384x16xf32>,
    return
  }
  func.func @transform_0(%arg0: i32) -> (i32, i32, i32) {
    %c0_i32 = arith.constant 0 : i32
    %c0_i32_0 = arith.constant 0 : i32
    %c0_i32_1 = arith.constant 0 : i32
    return %arg0, %c0_i32, %c0_i32_0 : i32, i32, i32
  }
  func.func @transform_1(%arg0: i32) -> (i32, i32) {
    %c0_i32 = arith.constant 0 : i32
    %c0_i32_0 = arith.constant 0 : i32
    %c0_i32_1 = arith.constant 0 : i32
    return %c0_i32, %c0_i32_0 : i32, i32
  }
  func.func @transform_2(%arg0: i32) -> (i32, i32) {
    %c0_i32 = arith.constant 0 : i32
    %c0_i32_0 = arith.constant 0 : i32
    %c0_i32_1 = arith.constant 0 : i32
    return %c0_i32, %c0_i32_0 : i32, i32
  }
  func.func @transform_3(%arg0: i32) -> (i32, i32) {
    %c0_i32 = arith.constant 0 : i32
    %c0_i32_0 = arith.constant 0 : i32
    %c0_i32_1 = arith.constant 0 : i32
    return %c0_i32, %c0_i32_0 : i32, i32
  }
  func.func @transform_4(%arg0: i32) -> (i32, i32, i32) {
    %c0_i32 = arith.constant 0 : i32
    %c0_i32_0 = arith.constant 0 : i32
    %c0_i32_1 = arith.constant 0 : i32
    return %arg0, %c0_i32, %c0_i32_0 : i32, i32, i32
  }
}

</mosaic_0001>

<llo_original>
// kernel: tpu_custom_call.1
$region0: #{tpu_custom_call.1}
  #allocation0 [shape = 'u32[]', space=smem, size = 0x4, offset = 0x4, fixed_abs, tag = 'smem constant byte address 0x4 - core index']
  #allocation1 [shape = 'u32[144,128]{1,0:T(1,128)}', space=vmem, size = 0x12000, scoped, tag = 'internal scratch']
  #allocation2 [shape = 'f32[440,64]{1,0:T(8,128)}', space=vmem, size = 0x37000, scoped, tag = 'scratch operand']
  %s0 = inlined_call_operand.vmem [shape: bf16[2,440,16], index: 0, kind: input, shape index: {}]
  %s1 = inlined_call_operand.vmem [shape: bf16[16,64], index: 1, kind: input, shape index: {}]
  %s2 = inlined_call_operand.vmem [shape: f32[9,64], index: 2, kind: input, shape index: {}]
  %s3 = inlined_call_operand.vmem [shape: bf16[64,16], index: 3, kind: input, shape index: {}]
  %s4 = inlined_call_operand.vmem [shape: f32[2,384,16], index: 4, kind: output, shape index: {}]
  %s5 = sld [smem:[#allocation0]]
  $region49: #{tpu_custom_call.1} parent=0
    _
  %s7 = ssub.s32 1, %s5
  %s8 = scalar_select 0, %s7, %s5
  loop: start=0, step=1, limit=4
  $region2: #{tpu_custom_call.1} parent=0 // loop_pre_header
    _
  $region3: #{tpu_custom_call.1} parent=0 // loop_header
    %s10 = sphi 0, %s14
    %p11 = scmp.ge.s32.totalorder %s10, 4
    %s20 = sphi 0, %s22
    %s23 = sphi 0, %s20
    %s24 = sphi 0, %s23
    %s40 = sphi 0, %s24
    %s44 = sphi 0, %s44
    %s46 = sphi 0, %s44
    %s47 = sphi 0, %s46
    %s61 = sphi 0, %s47
    %s65 = sphi 0, %s65
    %s67 = sphi 0, %s65
    %s68 = sphi 0, %s67
    %s82 = sphi 0, %s68
    %s86 = sphi 0, %s86
    %s88 = sphi 0, %s86
    %s89 = sphi 0, %s88
    %s103 = sphi 0, %s89
    %s109 = sphi 0, %s111
    %s112 = sphi 0, %s109
    %s113 = sphi 0, %s112
    %s129 = sphi 0, %s113
  $region4: #{tpu_custom_call.1} parent=0 // loop_header_branch
    %13 = sbr.rel (%p11) target = $region8
  $region5: #{tpu_custom_call.1} parent=0 // loop_body
    %s15 = ssub.s32 %s10, 1
    %s16 = ssub.s32 %s10, 2
    %s17 = sadd.s32 %s10, 1
    %s18 = ssub.s32 %s10, %s17
    %p19 = scmp.eq.s32.totalorder %s18, 0
    %s21 = sadd.s32 %s20, 1
    %s22 = scalar_select %p19, %s20, %s21
    %p25 = pneg %p19
    %p26 = scmp.eq.s32.totalorder %s10, 1
    %p27 = por %p25, %p26
    %p28 = scmp.ne.s32.totalorder %s20, %s23
    %p29 = scmp.eq.s32.totalorder %s10, 0
    %p30 = por %p28, %p29
    %p31 = scmp.ne.s32.totalorder %s20, %s23
    %p32 = scmp.eq.s32.totalorder %s15, 1
    %p33 = por %p31, %p32
    %p34 = scmp.ne.s32.totalorder %s23, %s24
    %p35 = scmp.eq.s32.totalorder %s15, 0
    %p36 = por %p34, %p35
    %p37 = scmp.ne.s32.totalorder %s23, %s24
    %p38 = scmp.eq.s32.totalorder %s16, 1
    %p39 = por %p37, %p38
    %p41 = scmp.ne.s32.totalorder %s24, %s40
    %p42 = scmp.eq.s32.totalorder %s16, 0
    %p43 = por %p41, %p42
    %s45 = sadd.s32 %s44, 1
    %p48 = scmp.eq.s32.totalorder %s10, 1
    %p49 = scmp.ne.s32.totalorder %s44, %s46
    %p50 = scmp.eq.s32.totalorder %s10, 0
    %p51 = por %p49, %p50
    %p52 = scmp.ne.s32.totalorder %s44, %s46
    %p53 = scmp.eq.s32.totalorder %s15, 1
    %p54 = por %p52, %p53
    %p55 = scmp.ne.s32.totalorder %s46, %s47
    %p56 = scmp.eq.s32.totalorder %s15, 0
    %p57 = por %p55, %p56
    %p58 = scmp.ne.s32.totalorder %s46, %s47
    %p59 = scmp.eq.s32.totalorder %s16, 1
    %p60 = por %p58, %p59
    %p62 = scmp.ne.s32.totalorder %s47, %s61
    %p63 = scmp.eq.s32.totalorder %s16, 0
    %p64 = por %p62, %p63
    %s66 = sadd.s32 %s65, 1
    %p69 = scmp.eq.s32.totalorder %s10, 1
    %p70 = scmp.ne.s32.totalorder %s65, %s67
    %p71 = scmp.eq.s32.totalorder %s10, 0
    %p72 = por %p70, %p71
    %p73 = scmp.ne.s32.totalorder %s65, %s67
    %p74 = scmp.eq.s32.totalorder %s15, 1
    %p75 = por %p73, %p74
    %p76 = scmp.ne.s32.totalorder %s67, %s68
    %p77 = scmp.eq.s32.totalorder %s15, 0
    %p78 = por %p76, %p77
    %p79 = scmp.ne.s32.totalorder %s67, %s68
    %p80 = scmp.eq.s32.totalorder %s16, 1
    %p81 = por %p79, %p80
    %p83 = scmp.ne.s32.totalorder %s68, %s82
    %p84 = scmp.eq.s32.totalorder %s16, 0
    %p85 = por %p83, %p84
    %s87 = sadd.s32 %s86, 1
    %p90 = scmp.eq.s32.totalorder %s10, 1
    %p91 = scmp.ne.s32.totalorder %s86, %s88
    %p92 = scmp.eq.s32.totalorder %s10, 0
    %p93 = por %p91, %p92
    %p94 = scmp.ne.s32.totalorder %s86, %s88
    %p95 = scmp.eq.s32.totalorder %s15, 1
    %p96 = por %p94, %p95
    %p97 = scmp.ne.s32.totalorder %s88, %s89
    %p98 = scmp.eq.s32.totalorder %s15, 0
    %p99 = por %p97, %p98
    %p100 = scmp.ne.s32.totalorder %s88, %s89
    %p101 = scmp.eq.s32.totalorder %s16, 1
    %p102 = por %p100, %p101
    %p104 = scmp.ne.s32.totalorder %s89, %s103
    %p105 = scmp.eq.s32.totalorder %s16, 0
    %p106 = por %p104, %p105
    %s107 = ssub.s32 %s10, %s17
    %p108 = scmp.eq.s32.totalorder %s107, 0
    %s110 = sadd.s32 %s109, 1
    %s111 = scalar_select %p108, %s109, %s110
    %p114 = pneg %p108
    %p115 = scmp.eq.s32.totalorder %s10, 1
    %p116 = por %p114, %p115
    %p117 = scmp.ne.s32.totalorder %s109, %s112
    %p118 = scmp.eq.s32.totalorder %s10, 0
    %p119 = por %p117, %p118
    %p120 = scmp.ne.s32.totalorder %s109, %s112
    %p121 = scmp.eq.s32.totalorder %s15, 1
    %p122 = por %p120, %p121
    %p123 = scmp.ne.s32.totalorder %s112, %s113
    %p124 = scmp.eq.s32.totalorder %s15, 0
    %p125 = por %p123, %p124
    %p126 = scmp.ne.s32.totalorder %s112, %s113
    %p127 = scmp.eq.s32.totalorder %s16, 1
    %p128 = por %p126, %p127
    %p130 = scmp.ne.s32.totalorder %s113, %s129
    %p131 = scmp.eq.s32.totalorder %s16, 0
    %p132 = por %p130, %p131
    %p133 = scmp.le.s32.totalorder 1, %s10
    %p134 = scmp.lt.s32.totalorder %s10, 3
    %p135 = pnand %p133, %p134
    %p136 = pneg %p135
    // Predicated region
    $region9: #{tpu_custom_call.1} parent=5 // pred_check
      _
    $region10: #{tpu_custom_call.1} parent=5 // pred_check_branch
      %138 = sbr.rel (%p135) target = $region12
    $region11: #{tpu_custom_call.1} parent=5 // pred_region
      %s139 = ssub.s32 %s10, 1
      // Predicated region
      $region13: #{tpu_custom_call.1} parent=11 // pred_check
        %p140 = pneg %p57
      $region14: #{tpu_custom_call.1} parent=11 // pred_check_branch
        %142 = sbr.rel (%p140) target = $region16
      $region15: #{tpu_custom_call.1} parent=11 // pred_region
        _
      $region16: #{tpu_custom_call.1} parent=11 // pred_fallthru
        _
      // Predicated region
      $region17: #{tpu_custom_call.1} parent=11 // pred_check
        %p143 = pneg %p78
      $region18: #{tpu_custom_call.1} parent=11 // pred_check_branch
        %145 = sbr.rel (%p143) target = $region20
      $region19: #{tpu_custom_call.1} parent=11 // pred_region
        _
      $region20: #{tpu_custom_call.1} parent=11 // pred_fallthru
        _
      // Predicated region
      $region21: #{tpu_custom_call.1} parent=11 // pred_check
        %p146 = pneg %p99
      $region22: #{tpu_custom_call.1} parent=11 // pred_check_branch
        %148 = sbr.rel (%p146) target = $region24
      $region23: #{tpu_custom_call.1} parent=11 // pred_region
        _
      $region24: #{tpu_custom_call.1} parent=11 // pred_fallthru
        _
    $region12: #{tpu_custom_call.1} parent=5 // pred_fallthru
      _
    %p149 = scmp.lt.s32.totalorder %s10, 2
    // Predicated region
    $region25: #{tpu_custom_call.1} parent=5 // pred_check
      %p150 = pneg %p149
    $region26: #{tpu_custom_call.1} parent=5 // pred_check_branch
      %152 = sbr.rel (%p150) target = $region28
    $region27: #{tpu_custom_call.1} parent=5 // pred_region
      // Predicated region
      $region29: #{tpu_custom_call.1} parent=27 // pred_check
        %p153 = pneg %p30
      $region30: #{tpu_custom_call.1} parent=27 // pred_check_branch
        %155 = sbr.rel (%p153) target = $region32
      $region31: #{tpu_custom_call.1} parent=27 // pred_region
        %p156 = scmp.lt.s32.totalorder %s10, 1
        %s157 = scalar_select %p156, %s10, 1
        %s158 = smul.addr %s157, 55
        %s159 = smul.addr %s158, 4
        %s160 = scalar_lea.vmem %s0, %s159
      $region32: #{tpu_custom_call.1} parent=27 // pred_fallthru
        _
    $region28: #{tpu_custom_call.1} parent=5 // pred_fallthru
      _
    %p161 = scmp.le.s32.totalorder 1, %s10
    %p162 = scmp.lt.s32.totalorder %s10, 3
    %p163 = pnand %p161, %p162
    %p164 = pneg %p163
    // Predicated region
    $region33: #{tpu_custom_call.1} parent=5 // pred_check
      _
    $region34: #{tpu_custom_call.1} parent=5 // pred_check_branch
      %166 = sbr.rel (%p163) target = $region36
    $region35: #{tpu_custom_call.1} parent=5 // pred_region
      %s167 = ssub.s32 %s10, 1
      %p168 = scmp.lt.s32.totalorder %s15, 1
      %s169 = scalar_select %p168, %s15, 1
      %s170 = smul.addr %s169, 55
      %s171 = smul.addr %s170, 4
      %s172 = scalar_lea.vmem %s0, %s171
      %p173 = pneg %p36
      %p174 = pneg %p33
      %p175 = pneg %p57
      %p176 = pneg %p54
      %p177 = pneg %p78
      %p178 = pneg %p75
      %p179 = pneg %p99
      %p180 = pneg %p96
      %p181 = pneg %p125
      %p182 = pneg %p122
      %p183 = scmp.lt.s32.totalorder %s15, 1
      %s184 = scalar_select %p183, %s15, 1
      %s185 = smul.addr %s184, 48
      %s186 = smul.addr %s185, 8
      %s187 = scalar_lea.vmem %s4, %s186
      %p188 = scmp.lt.s32.totalorder %s15, 1
      %s189 = scalar_select %p188, %s15, 1
      %s190 = smul.addr %s189, 55
      %s191 = smul.addr %s190, 4
      %s192 = scalar_lea.vmem %s0, %s191
      %p193 = scmp.lt.s32.totalorder %s15, 1
      %s194 = scalar_select %p193, %s15, 1
      %s195 = smul.addr %s194, 48
      %s196 = smul.addr %s195, 8
      %s197 = scalar_lea.vmem %s4, %s196
      %v199 = vld [vmem:[%s192] sm:$0xf]
      %v200 = vld [vmem:[%s192 + $0x4] sm:$0xf]
      %v201 = vld [vmem:[%s192 + $0x8] sm:$0xf]
      %v202 = vld [vmem:[%s192 + $0xc] sm:$0xf]
      %v203 = vld [vmem:[%s192 + $0x10] sm:$0xf]
      %v204 = vld [vmem:[%s192 + $0x14] sm:$0xf]
      %v205 = vld [vmem:[%s192 + $0x18] sm:$0xf]
      %v206 = vld [vmem:[%s192 + $0x1c] sm:$0xf]
      %v207 = vld [vmem:[%s192 + $0x20] sm:$0xf]
      %v208 = vld [vmem:[%s192 + $0x24] sm:$0xf]
      %v209 = vld [vmem:[%s192 + $0x28] sm:$0xf]
      %v210 = vld [vmem:[%s192 + $0x2c] sm:$0xf]
      %v211 = vld [vmem:[%s192 + $0x30] sm:$0xf]
      %v212 = vld [vmem:[%s192 + $0x34] sm:$0xf]
      %v213 = vld [vmem:[%s192 + $0x38] sm:$0xf]
      %v214 = vld [vmem:[%s192 + $0x3c] sm:$0xf]
      %v215 = vld [vmem:[%s192 + $0x40] sm:$0xf]
      %v216 = vld [vmem:[%s192 + $0x44] sm:$0xf]
      %v217 = vld [vmem:[%s192 + $0x48] sm:$0xf]
      %v218 = vld [vmem:[%s192 + $0x4c] sm:$0xf]
      %v219 = vld [vmem:[%s192 + $0x50] sm:$0xf]
      %v220 = vld [vmem:[%s192 + $0x54] sm:$0xf]
      %v221 = vld [vmem:[%s192 + $0x58] sm:$0xf]
      %v222 = vld [vmem:[%s192 + $0x5c] sm:$0xf]
      %v223 = vld [vmem:[%s192 + $0x60] sm:$0xf]
      %v224 = vld [vmem:[%s192 + $0x64] sm:$0xf]
      %v225 = vld [vmem:[%s192 + $0x68] sm:$0xf]
      %v226 = vld [vmem:[%s192 + $0x6c] sm:$0xf]
      %v227 = vld [vmem:[%s192 + $0x70] sm:$0xf]
      %v228 = vld [vmem:[%s192 + $0x74] sm:$0xf]
      %v229 = vld [vmem:[%s192 + $0x78] sm:$0xf]
      %v230 = vld [vmem:[%s192 + $0x7c] sm:$0xf]
      %v231 = vld [vmem:[%s192 + $0x80] sm:$0xf]
      %v232 = vld [vmem:[%s192 + $0x84] sm:$0xf]
      %v233 = vld [vmem:[%s192 + $0x88] sm:$0xf]
      %v234 = vld [vmem:[%s192 + $0x8c] sm:$0xf]
      %v235 = vld [vmem:[%s192 + $0x90] sm:$0xf]
      %v236 = vld [vmem:[%s192 + $0x94] sm:$0xf]
      %v237 = vld [vmem:[%s192 + $0x98] sm:$0xf]
      %v238 = vld [vmem:[%s192 + $0x9c] sm:$0xf]
      %v239 = vld [vmem:[%s192 + $0xa0] sm:$0xf]
      %v240 = vld [vmem:[%s192 + $0xa4] sm:$0xf]
      %v241 = vld [vmem:[%s192 + $0xa8] sm:$0xf]
      %v242 = vld [vmem:[%s192 + $0xac] sm:$0xf]
      %v243 = vld [vmem:[%s192 + $0xb0] sm:$0xf]
      %v244 = vld [vmem:[%s192 + $0xb4] sm:$0xf]
      %v245 = vld [vmem:[%s192 + $0xb8] sm:$0xf]
      %v246 = vld [vmem:[%s192 + $0xbc] sm:$0xf]
      %v247 = vld [vmem:[%s192 + $0xc0] sm:$0xf]
      %v248 = vld [vmem:[%s192 + $0xc4] sm:$0xf]
      %v249 = vld [vmem:[%s192 + $0xc8] sm:$0xf]
      %v250 = vld [vmem:[%s192 + $0xcc] sm:$0xf]
      %v251 = vld [vmem:[%s192 + $0xd0] sm:$0xf]
      %v252 = vld [vmem:[%s192 + $0xd4] sm:$0xf]
      %v253 = vld [vmem:[%s192 + $0xd8] sm:$0xf]
      %v254 = vld [vmem:[%s1] sm:$0xf]
      %v255 = vld [vmem:[%s1 + $0x4] sm:$0xf]
      %v311 = vunpack.c.l.b16 %v199
      %v312 = vunpack.c.l.b16 %v200
      %v313 = vunpack.c.l.b16 %v201
      %v314 = vunpack.c.l.b16 %v202
      %v315 = vunpack.c.l.b16 %v203
      %v316 = vunpack.c.l.b16 %v204
      %v317 = vunpack.c.l.b16 %v205
      %v318 = vunpack.c.l.b16 %v206
      %v319 = vunpack.c.l.b16 %v207
      %v320 = vunpack.c.l.b16 %v208
      %v321 = vunpack.c.l.b16 %v209
      %v322 = vunpack.c.l.b16 %v210
      %v323 = vunpack.c.l.b16 %v211
      %v324 = vunpack.c.l.b16 %v212
      %v325 = vunpack.c.l.b16 %v213
      %v326 = vunpack.c.l.b16 %v214
      %v327 = vunpack.c.l.b16 %v215
      %v328 = vunpack.c.l.b16 %v216
      %v329 = vunpack.c.l.b16 %v217
      %v330 = vunpack.c.l.b16 %v218
      %v331 = vunpack.c.l.b16 %v219
      %v332 = vunpack.c.l.b16 %v220
      %v333 = vunpack.c.l.b16 %v221
      %v334 = vunpack.c.l.b16 %v222
      %v335 = vunpack.c.l.b16 %v223
      %v336 = vunpack.c.l.b16 %v224
      %v337 = vunpack.c.l.b16 %v225
      %v338 = vunpack.c.l.b16 %v226
      %v339 = vunpack.c.l.b16 %v227
      %v340 = vunpack.c.l.b16 %v228
      %v341 = vunpack.c.l.b16 %v229
      %v342 = vunpack.c.l.b16 %v230
      %v343 = vunpack.c.l.b16 %v231
      %v344 = vunpack.c.l.b16 %v232
      %v345 = vunpack.c.l.b16 %v233
      %v346 = vunpack.c.l.b16 %v234
      %v347 = vunpack.c.l.b16 %v235
      %v348 = vunpack.c.l.b16 %v236
      %v349 = vunpack.c.l.b16 %v237
      %v350 = vunpack.c.l.b16 %v238
      %v351 = vunpack.c.l.b16 %v239
      %v352 = vunpack.c.l.b16 %v240
      %v353 = vunpack.c.l.b16 %v241
      %v354 = vunpack.c.l.b16 %v242
      %v355 = vunpack.c.l.b16 %v243
      %v356 = vunpack.c.l.b16 %v244
      %v357 = vunpack.c.l.b16 %v245
      %v358 = vunpack.c.l.b16 %v246
      %v359 = vunpack.c.l.b16 %v247
      %v360 = vunpack.c.l.b16 %v248
      %v361 = vunpack.c.l.b16 %v249
      %v362 = vunpack.c.l.b16 %v250
      %v363 = vunpack.c.l.b16 %v251
      %v364 = vunpack.c.l.b16 %v252
      %v365 = vunpack.c.l.b16 %v253
      %v366 = vpack.c.b16 %v312, %v311
      %v367 = vpack.c.b16 %v314, %v313
      %v368 = vpack.c.b16 %v316, %v315
      %v369 = vpack.c.b16 %v318, %v317
      %v370 = vpack.c.b16 %v320, %v319
      %v371 = vpack.c.b16 %v322, %v321
      %v372 = vpack.c.b16 %v324, %v323
      %v373 = vpack.c.b16 %v326, %v325
      %v374 = vpack.c.b16 %v328, %v327
      %v375 = vpack.c.b16 %v330, %v329
      %v376 = vpack.c.b16 %v332, %v331
      %v377 = vpack.c.b16 %v334, %v333
      %v378 = vpack.c.b16 %v336, %v335
      %v379 = vpack.c.b16 %v338, %v337
      %v380 = vpack.c.b16 %v340, %v339
      %v381 = vpack.c.b16 %v342, %v341
      %v382 = vpack.c.b16 %v344, %v343
      %v383 = vpack.c.b16 %v346, %v345
      %v384 = vpack.c.b16 %v348, %v347
      %v385 = vpack.c.b16 %v350, %v349
      %v386 = vpack.c.b16 %v352, %v351
      %v387 = vpack.c.b16 %v354, %v353
      %v388 = vpack.c.b16 %v356, %v355
      %v389 = vpack.c.b16 %v358, %v357
      %v390 = vpack.c.b16 %v360, %v359
      %v391 = vpack.c.b16 %v362, %v361
      %v392 = vpack.c.b16 %v364, %v363
      %v393 = vpack.c.b16 %v365, %v365
      %v396 = vunpack.c.l.b16 %v254
      %v397 = vunpack.c.l.b16 %v255
      %v398 = vpack.c.b16 %v397, %v396
      %vm400 = vcmask 130048
      %v402 = vsel %vm400, %v366, 0
      %v405 = vsel %vm400, %v367, 0
      %v408 = vsel %vm400, %v368, 0
      %v411 = vsel %vm400, %v369, 0
      %v414 = vsel %vm400, %v370, 0
      %v417 = vsel %vm400, %v371, 0
      %v420 = vsel %vm400, %v372, 0
      %v423 = vsel %vm400, %v373, 0
      %v426 = vsel %vm400, %v374, 0
      %v429 = vsel %vm400, %v375, 0
      %v432 = vsel %vm400, %v376, 0
      %v435 = vsel %vm400, %v377, 0
      %v438 = vsel %vm400, %v378, 0
      %v441 = vsel %vm400, %v379, 0
      %v444 = vsel %vm400, %v380, 0
      %v447 = vsel %vm400, %v381, 0
      %v450 = vsel %vm400, %v382, 0
      %v453 = vsel %vm400, %v383, 0
      %v456 = vsel %vm400, %v384, 0
      %v459 = vsel %vm400, %v385, 0
      %v462 = vsel %vm400, %v386, 0
      %v465 = vsel %vm400, %v387, 0
      %v468 = vsel %vm400, %v388, 0
      %v471 = vsel %vm400, %v389, 0
      %v474 = vsel %vm400, %v390, 0
      %v477 = vsel %vm400, %v391, 0
      %v480 = vsel %vm400, %v392, 0
      %v483 = vsel %vm400, %v393, 0
      %485 = vmatprep.subr.bf16.mxu0 0
      %486 = vmatpush1.bf16.msra.mxu0 %v398
      %487 = vmatprep.subr.bf16.mxu0 0
      %488 = vmatpush1.bf16.msra.mxu0 0
      %489 = vmatprep.subr.bf16.mxu0 0
      %490 = vmatpush1.bf16.msra.mxu0 0
      %491 = vmatprep.subr.bf16.mxu0 0
      %492 = vmatpush1.bf16.msra.mxu0 0
      %493 = vmatprep.subr.bf16.mxu0 0
      %494 = vmatpush1.bf16.msra.mxu0 0
      %495 = vmatprep.subr.bf16.mxu0 0
      %496 = vmatpush1.bf16.msra.mxu0 0
      %497 = vmatprep.subr.bf16.mxu0 0
      %498 = vmatpush1.bf16.msra.mxu0 0
      %499 = vmatprep.subr.bf16.mxu0 0
      %500 = vmatpush1.bf16.msra.mxu0 0
      %501 = vmatprep.subr.bf16.mxu0 0
      %502 = vmatpush1.bf16.msra.mxu0 0
      %503 = vmatprep.subr.bf16.mxu0 0
      %504 = vmatpush1.bf16.msra.mxu0 0
      %505 = vmatprep.subr.bf16.mxu0 0
      %506 = vmatpush1.bf16.msra.mxu0 0
      %507 = vmatprep.subr.bf16.mxu0 0
      %508 = vmatpush1.bf16.msra.mxu0 0
      %509 = vmatprep.subr.bf16.mxu0 0
      %510 = vmatpush1.bf16.msra.mxu0 0
      %511 = vmatprep.subr.bf16.mxu0 0
      %512 = vmatpush1.bf16.msra.mxu0 0
      %513 = vmatprep.subr.bf16.mxu0 0
      %514 = vmatpush1.bf16.msra.mxu0 0
      %515 = vmatprep.subr.bf16.mxu0 0
      %516 = vmatpush1.bf16.msra.mxu0 0
      %517 = vmatprep.mubr.bf16.mxu0 0
      %518 = vmatmul.mubr.bf16.gmra.mrb[0].mxu0 %v402
      %v519 = vpop.f32.mrb[0].mxu0
      %v520 = vadd.f32 0.0, %v519
      %v521 = vpop.f32.mrb[0].mxu0
      %v522 = vpop.f32.mrb[0].mxu0
      %v523 = vadd.f32 0.0, %v522
      %v524 = vpop.f32.mrb[0].mxu0
      %525 = vmatprep.mubr.bf16.mxu0 0
      %526 = vmatmul.mubr.bf16.gmra.mrb[0].mxu0 %v405
      %v527 = vpop.f32.mrb[0].mxu0
      %v528 = vadd.f32 0.0, %v527
      %v529 = vpop.f32.mrb[0].mxu0
      %v530 = vpop.f32.mrb[0].mxu0
      %v531 = vadd.f32 0.0, %v530
      %v532 = vpop.f32.mrb[0].mxu0
      %533 = vmatprep.mubr.bf16.mxu0 0
      %534 = vmatmul.mubr.bf16.gmra.mrb[0].mxu0 %v408
      %v535 = vpop.f32.mrb[0].mxu0
      %v536 = vadd.f32 0.0, %v535
      %v537 = vpop.f32.mrb[0].mxu0
      %v538 = vpop.f32.mrb[0].mxu0
      %v539 = vadd.f32 0.0, %v538
      %v540 = vpop.f32.mrb[0].mxu0
      %541 = vmatprep.mubr.bf16.mxu0 0
      %542 = vmatmul.mubr.bf16.gmra.mrb[0].mxu0 %v411
      %v543 = vpop.f32.mrb[0].mxu0
      %v544 = vadd.f32 0.0, %v543
      %v545 = vpop.f32.mrb[0].mxu0
      %v546 = vpop.f32.mrb[0].mxu0
      %v547 = vadd.f32 0.0, %v546
      %v548 = vpop.f32.mrb[0].mxu0
      %549 = vmatprep.mubr.bf16.mxu0 0
      %550 = vmatmul.mubr.bf16.gmra.mrb[0].mxu0 %v414
      %v551 = vpop.f32.mrb[0].mxu0
      %v552 = vadd.f32 0.0, %v551
      %v553 = vpop.f32.mrb[0].mxu0
      %v554 = vpop.f32.mrb[0].mxu0
      %v555 = vadd.f32 0.0, %v554
      %v556 = vpop.f32.mrb[0].mxu0
      %557 = vmatprep.mubr.bf16.mxu0 0
      %558 = vmatmul.mubr.bf16.gmra.mrb[0].mxu0 %v417
      %v559 = vpop.f32.mrb[0].mxu0
      %v560 = vadd.f32 0.0, %v559
      %v561 = vpop.f32.mrb[0].mxu0
      %v562 = vpop.f32.mrb[0].mxu0
      %v563 = vadd.f32 0.0, %v562
      %v564 = vpop.f32.mrb[0].mxu0
      %565 = vmatprep.mubr.bf16.mxu0 0
      %566 = vmatmul.mubr.bf16.gmra.mrb[0].mxu0 %v420
      %v567 = vpop.f32.mrb[0].mxu0
      %v568 = vadd.f32 0.0, %v567
      %v569 = vpop.f32.mrb[0].mxu0
      %v570 = vpop.f32.mrb[0].mxu0
      %v571 = vadd.f32 0.0, %v570
      %v572 = vpop.f32.mrb[0].mxu0
      %573 = vmatprep.mubr.bf16.mxu0 0
      %574 = vmatmul.mubr.bf16.gmra.mrb[0].mxu0 %v423
      %v575 = vpop.f32.mrb[0].mxu0
      %v576 = vadd.f32 0.0, %v575
      %v577 = vpop.f32.mrb[0].mxu0
      %v578 = vpop.f32.mrb[0].mxu0
      %v579 = vadd.f32 0.0, %v578
      %v580 = vpop.f32.mrb[0].mxu0
      %581 = vmatprep.mubr.bf16.mxu0 0
      %582 = vmatmul.mubr.bf16.gmra.mrb[0].mxu0 %v426
      %v583 = vpop.f32.mrb[0].mxu0
      %v584 = vadd.f32 0.0, %v583
      %v585 = vpop.f32.mrb[0].mxu0
      %v586 = vpop.f32.mrb[0].mxu0
      %v587 = vadd.f32 0.0, %v586
      %v588 = vpop.f32.mrb[0].mxu0
      %589 = vmatprep.mubr.bf16.mxu0 0
      %590 = vmatmul.mubr.bf16.gmra.mrb[0].mxu0 %v429
      %v591 = vpop.f32.mrb[0].mxu0
      %v592 = vadd.f32 0.0, %v591
      %v593 = vpop.f32.mrb[0].mxu0
      %v594 = vpop.f32.mrb[0].mxu0
      %v595 = vadd.f32 0.0, %v594
      %v596 = vpop.f32.mrb[0].mxu0
      %597 = vmatprep.mubr.bf16.mxu0 0
      %598 = vmatmul.mubr.bf16.gmra.mrb[0].mxu0 %v432
      %v599 = vpop.f32.mrb[0].mxu0
      %v600 = vadd.f32 0.0, %v599
      %v601 = vpop.f32.mrb[0].mxu0
      %v602 = vpop.f32.mrb[0].mxu0
      %v603 = vadd.f32 0.0, %v602
      %v604 = vpop.f32.mrb[0].mxu0
      %605 = vmatprep.mubr.bf16.mxu0 0
      %606 = vmatmul.mubr.bf16.gmra.mrb[0].mxu0 %v435
      %v607 = vpop.f32.mrb[0].mxu0
      %v608 = vadd.f32 0.0, %v607
      %v609 = vpop.f32.mrb[0].mxu0
      %v610 = vpop.f32.mrb[0].mxu0
      %v611 = vadd.f32 0.0, %v610
      %v612 = vpop.f32.mrb[0].mxu0
      %613 = vmatprep.mubr.bf16.mxu0 0
      %614 = vmatmul.mubr.bf16.gmra.mrb[0].mxu0 %v438
      %v615 = vpop.f32.mrb[0].mxu0
      %v616 = vadd.f32 0.0, %v615
      %v617 = vpop.f32.mrb[0].mxu0
      %v618 = vpop.f32.mrb[0].mxu0
      %v619 = vadd.f32 0.0, %v618
      %v620 = vpop.f32.mrb[0].mxu0
      %621 = vmatprep.mubr.bf16.mxu0 0
      %622 = vmatmul.mubr.bf16.gmra.mrb[0].mxu0 %v441
      %v623 = vpop.f32.mrb[0].mxu0
      %v624 = vadd.f32 0.0, %v623
      %v625 = vpop.f32.mrb[0].mxu0
      %v626 = vpop.f32.mrb[0].mxu0
      %v627 = vadd.f32 0.0, %v626
      %v628 = vpop.f32.mrb[0].mxu0
      %629 = vmatprep.mubr.bf16.mxu0 0
      %630 = vmatmul.mubr.bf16.gmra.mrb[0].mxu0 %v444
      %v631 = vpop.f32.mrb[0].mxu0
      %v632 = vadd.f32 0.0, %v631
      %v633 = vpop.f32.mrb[0].mxu0
      %v634 = vpop.f32.mrb[0].mxu0
      %v635 = vadd.f32 0.0, %v634
      %v636 = vpop.f32.mrb[0].mxu0
      %637 = vmatprep.mubr.bf16.mxu0 0
      %638 = vmatmul.mubr.bf16.gmra.mrb[0].mxu0 %v447
      %v639 = vpop.f32.mrb[0].mxu0
      %v640 = vadd.f32 0.0, %v639
      %v641 = vpop.f32.mrb[0].mxu0
      %v642 = vpop.f32.mrb[0].mxu0
      %v643 = vadd.f32 0.0, %v642
      %v644 = vpop.f32.mrb[0].mxu0
      %645 = vmatprep.mubr.bf16.mxu0 0
      %646 = vmatmul.mubr.bf16.gmra.mrb[0].mxu0 %v450
      %v647 = vpop.f32.mrb[0].mxu0
      %v648 = vadd.f32 0.0, %v647
      %v649 = vpop.f32.mrb[0].mxu0
      %v650 = vpop.f32.mrb[0].mxu0
      %v651 = vadd.f32 0.0, %v650
      %v652 = vpop.f32.mrb[0].mxu0
      %653 = vmatprep.mubr.bf16.mxu0 0
      %654 = vmatmul.mubr.bf16.gmra.mrb[0].mxu0 %v453
      %v655 = vpop.f32.mrb[0].mxu0
      %v656 = vadd.f32 0.0, %v655
      %v657 = vpop.f32.mrb[0].mxu0
      %v658 = vpop.f32.mrb[0].mxu0
      %v659 = vadd.f32 0.0, %v658
      %v660 = vpop.f32.mrb[0].mxu0
      %661 = vmatprep.mubr.bf16.mxu0 0
      %662 = vmatmul.mubr.bf16.gmra.mrb[0].mxu0 %v456
      %v663 = vpop.f32.mrb[0].mxu0
      %v664 = vadd.f32 0.0, %v663
      %v665 = vpop.f32.mrb[0].mxu0
      %v666 = vpop.f32.mrb[0].mxu0
      %v667 = vadd.f32 0.0, %v666
      %v668 = vpop.f32.mrb[0].mxu0
      %669 = vmatprep.mubr.bf16.mxu0 0
      %670 = vmatmul.mubr.bf16.gmra.mrb[0].mxu0 %v459
      %v671 = vpop.f32.mrb[0].mxu0
      %v672 = vadd.f32 0.0, %v671
      %v673 = vpop.f32.mrb[0].mxu0
      %v674 = vpop.f32.mrb[0].mxu0
      %v675 = vadd.f32 0.0, %v674
      %v676 = vpop.f32.mrb[0].mxu0
      %677 = vmatprep.mubr.bf16.mxu0 0
      %678 = vmatmul.mubr.bf16.gmra.mrb[0].mxu0 %v462
      %v679 = vpop.f32.mrb[0].mxu0
      %v680 = vadd.f32 0.0, %v679
      %v681 = vpop.f32.mrb[0].mxu0
      %v682 = vpop.f32.mrb[0].mxu0
      %v683 = vadd.f32 0.0, %v682
      %v684 = vpop.f32.mrb[0].mxu0
      %685 = vmatprep.mubr.bf16.mxu0 0
      %686 = vmatmul.mubr.bf16.gmra.mrb[0].mxu0 %v465
      %v687 = vpop.f32.mrb[0].mxu0
      %v688 = vadd.f32 0.0, %v687
      %v689 = vpop.f32.mrb[0].mxu0
      %v690 = vpop.f32.mrb[0].mxu0
      %v691 = vadd.f32 0.0, %v690
      %v692 = vpop.f32.mrb[0].mxu0
      %693 = vmatprep.mubr.bf16.mxu0 0
      %694 = vmatmul.mubr.bf16.gmra.mrb[0].mxu0 %v468
      %v695 = vpop.f32.mrb[0].mxu0
      %v696 = vadd.f32 0.0, %v695
      %v697 = vpop.f32.mrb[0].mxu0
      %v698 = vpop.f32.mrb[0].mxu0
      %v699 = vadd.f32 0.0, %v698
      %v700 = vpop.f32.mrb[0].mxu0
      %701 = vmatprep.mubr.bf16.mxu0 0
      %702 = vmatmul.mubr.bf16.gmra.mrb[0].mxu0 %v471
      %v703 = vpop.f32.mrb[0].mxu0
      %v704 = vadd.f32 0.0, %v703
      %v705 = vpop.f32.mrb[0].mxu0
      %v706 = vpop.f32.mrb[0].mxu0
      %v707 = vadd.f32 0.0, %v706
      %v708 = vpop.f32.mrb[0].mxu0
      %709 = vmatprep.mubr.bf16.mxu0 0
      %710 = vmatmul.mubr.bf16.gmra.mrb[0].mxu0 %v474
      %v711 = vpop.f32.mrb[0].mxu0
      %v712 = vadd.f32 0.0, %v711
      %v713 = vpop.f32.mrb[0].mxu0
      %v714 = vpop.f32.mrb[0].mxu0
      %v715 = vadd.f32 0.0, %v714
      %v716 = vpop.f32.mrb[0].mxu0
      %717 = vmatprep.mubr.bf16.mxu0 0
      %718 = vmatmul.mubr.bf16.gmra.mrb[0].mxu0 %v477
      %v719 = vpop.f32.mrb[0].mxu0
      %v720 = vadd.f32 0.0, %v719
      %v721 = vpop.f32.mrb[0].mxu0
      %v722 = vpop.f32.mrb[0].mxu0
      %v723 = vadd.f32 0.0, %v722
      %v724 = vpop.f32.mrb[0].mxu0
      %725 = vmatprep.mubr.bf16.mxu0 0
      %726 = vmatmul.mubr.bf16.gmra.mrb[0].mxu0 %v480
      %v727 = vpop.f32.mrb[0].mxu0
      %v728 = vadd.f32 0.0, %v727
      %v729 = vpop.f32.mrb[0].mxu0
      %v730 = vpop.f32.mrb[0].mxu0
      %v731 = vadd.f32 0.0, %v730
      %v732 = vpop.f32.mrb[0].mxu0
      %733 = vmatprep.mubr.bf16.mxu0 0
      %734 = vmatmul.mubr.bf16.gmra.mrb[0].mxu0 %v483
      %v735 = vpop.f32.mrb[0].mxu0
      %v736 = vadd.f32 0.0, %v735
      %v737 = vpop.f32.mrb[0].mxu0
      %v738 = vpop.f32.mrb[0].mxu0
      %v739 = vpop.f32.mrb[0].mxu0
      %740 = vdwg.mxu0
      %vm741 = vcmask 523264
      %742 = vst.msk [vmem:[#allocation2] sm:$0xff] %vm741, %v520
      %743 = vst.msk [vmem:[#allocation2 + $0x8] sm:$0xff] %vm741, %v523
      %744 = vst.msk [vmem:[#allocation2 + $0x10] sm:$0xff] %vm741, %v528
      %745 = vst.msk [vmem:[#allocation2 + $0x18] sm:$0xff] %vm741, %v531
      %746 = vst.msk [vmem:[#allocation2 + $0x20] sm:$0xff] %vm741, %v536
      %747 = vst.msk [vmem:[#allocation2 + $0x28] sm:$0xff] %vm741, %v539
      %748 = vst.msk [vmem:[#allocation2 + $0x30] sm:$0xff] %vm741, %v544
      %749 = vst.msk [vmem:[#allocation2 + $0x38] sm:$0xff] %vm741, %v547
      %750 = vst.msk [vmem:[#allocation2 + $0x40] sm:$0xff] %vm741, %v552
      %751 = vst.msk [vmem:[#allocation2 + $0x48] sm:$0xff] %vm741, %v555
      %752 = vst.msk [vmem:[#allocation2 + $0x50] sm:$0xff] %vm741, %v560
      %753 = vst.msk [vmem:[#allocation2 + $0x58] sm:$0xff] %vm741, %v563
      %754 = vst.msk [vmem:[#allocation2 + $0x60] sm:$0xff] %vm741, %v568
      %755 = vst.msk [vmem:[#allocation2 + $0x68] sm:$0xff] %vm741, %v571
      %756 = vst.msk [vmem:[#allocation2 + $0x70] sm:$0xff] %vm741, %v576
      %757 = vst.msk [vmem:[#allocation2 + $0x78] sm:$0xff] %vm741, %v579
      %758 = vst.msk [vmem:[#allocation2 + $0x80] sm:$0xff] %vm741, %v584
      %759 = vst.msk [vmem:[#allocation2 + $0x88] sm:$0xff] %vm741, %v587
      %760 = vst.msk [vmem:[#allocation2 + $0x90] sm:$0xff] %vm741, %v592
      %761 = vst.msk [vmem:[#allocation2 + $0x98] sm:$0xff] %vm741, %v595
      %762 = vst.msk [vmem:[#allocation2 + $0xa0] sm:$0xff] %vm741, %v600
      %763 = vst.msk [vmem:[#allocation2 + $0xa8] sm:$0xff] %vm741, %v603
      %764 = vst.msk [vmem:[#allocation2 + $0xb0] sm:$0xff] %vm741, %v608
      %765 = vst.msk [vmem:[#allocation2 + $0xb8] sm:$0xff] %vm741, %v611
      %766 = vst.msk [vmem:[#allocation2 + $0xc0] sm:$0xff] %vm741, %v616
      %767 = vst.msk [vmem:[#allocation2 + $0xc8] sm:$0xff] %vm741, %v619
      %768 = vst.msk [vmem:[#allocation2 + $0xd0] sm:$0xff] %vm741, %v624
      %769 = vst.msk [vmem:[#allocation2 + $0xd8] sm:$0xff] %vm741, %v627
      %770 = vst.msk [vmem:[#allocation2 + $0xe0] sm:$0xff] %vm741, %v632
      %771 = vst.msk [vmem:[#allocation2 + $0xe8] sm:$0xff] %vm741, %v635
      %772 = vst.msk [vmem:[#allocation2 + $0xf0] sm:$0xff] %vm741, %v640
      %773 = vst.msk [vmem:[#allocation2 + $0xf8] sm:$0xff] %vm741, %v643
      %774 = vst.msk [vmem:[#allocation2 + $0x100] sm:$0xff] %vm741, %v648
      %775 = vst.msk [vmem:[#allocation2 + $0x108] sm:$0xff] %vm741, %v651
      %776 = vst.msk [vmem:[#allocation2 + $0x110] sm:$0xff] %vm741, %v656
      %777 = vst.msk [vmem:[#allocation2 + $0x118] sm:$0xff] %vm741, %v659
      %778 = vst.msk [vmem:[#allocation2 + $0x120] sm:$0xff] %vm741, %v664
      %779 = vst.msk [vmem:[#allocation2 + $0x128] sm:$0xff] %vm741, %v667
      %780 = vst.msk [vmem:[#allocation2 + $0x130] sm:$0xff] %vm741, %v672
      %781 = vst.msk [vmem:[#allocation2 + $0x138] sm:$0xff] %vm741, %v675
      %782 = vst.msk [vmem:[#allocation2 + $0x140] sm:$0xff] %vm741, %v680
      %783 = vst.msk [vmem:[#allocation2 + $0x148] sm:$0xff] %vm741, %v683
      %784 = vst.msk [vmem:[#allocation2 + $0x150] sm:$0xff] %vm741, %v688
      %785 = vst.msk [vmem:[#allocation2 + $0x158] sm:$0xff] %vm741, %v691
      %786 = vst.msk [vmem:[#allocation2 + $0x160] sm:$0xff] %vm741, %v696
      %787 = vst.msk [vmem:[#allocation2 + $0x168] sm:$0xff] %vm741, %v699
      %788 = vst.msk [vmem:[#allocation2 + $0x170] sm:$0xff] %vm741, %v704
      %789 = vst.msk [vmem:[#allocation2 + $0x178] sm:$0xff] %vm741, %v707
      %790 = vst.msk [vmem:[#allocation2 + $0x180] sm:$0xff] %vm741, %v712
      %791 = vst.msk [vmem:[#allocation2 + $0x188] sm:$0xff] %vm741, %v715
      %792 = vst.msk [vmem:[#allocation2 + $0x190] sm:$0xff] %vm741, %v720
      %793 = vst.msk [vmem:[#allocation2 + $0x198] sm:$0xff] %vm741, %v723
      %794 = vst.msk [vmem:[#allocation2 + $0x1a0] sm:$0xff] %vm741, %v728
      %795 = vst.msk [vmem:[#allocation2 + $0x1a8] sm:$0xff] %vm741, %v731
      %796 = vst.msk [vmem:[#allocation2 + $0x1b0] sm:$0xff] %vm741, %v736
      %v797 = vld [vmem:[%s2] sm:$0xff]
      %v798 = vld [vmem:[%s2 + $0x8] sm:$0x1]
      %v799 = vld [vmem:[#allocation2] sm:$0xff]
      %v800 = vld [vmem:[#allocation2 + $0x8] sm:$0xff]
      %v801 = vld [vmem:[#allocation2 + $0x10] sm:$0xff]
      %v802 = vld [vmem:[#allocation2 + $0x18] sm:$0xff]
      %v803 = vld [vmem:[#allocation2 + $0x20] sm:$0xff]
      %v804 = vld [vmem:[#allocation2 + $0x28] sm:$0xff]
      %v805 = vld [vmem:[#allocation2 + $0x30] sm:$0xff]
      %v806 = vld [vmem:[#allocation2 + $0x38] sm:$0xff]
      %v807 = vld [vmem:[#allocation2 + $0x40] sm:$0xff]
      %v808 = vld [vmem:[#allocation2 + $0x48] sm:$0xff]
      %v809 = vld [vmem:[#allocation2 + $0x50] sm:$0xff]
      %v810 = vld [vmem:[#allocation2 + $0x58] sm:$0xff]
      %v811 = vld [vmem:[#allocation2 + $0x60] sm:$0xff]
      %v812 = vld [vmem:[#allocation2 + $0x68] sm:$0xff]
      %v813 = vld [vmem:[#allocation2 + $0x70] sm:$0xff]
      %v814 = vld [vmem:[#allocation2 + $0x78] sm:$0xff]
      %v815 = vld [vmem:[#allocation2 + $0x80] sm:$0xff]
      %v816 = vld [vmem:[#allocation2 + $0x88] sm:$0xff]
      %v817 = vld [vmem:[#allocation2 + $0x90] sm:$0xff]
      %v818 = vld [vmem:[#allocation2 + $0x98] sm:$0xff]
      %v819 = vld [vmem:[#allocation2 + $0xa0] sm:$0xff]
      %v820 = vld [vmem:[#allocation2 + $0xa8] sm:$0xff]
      %v821 = vld [vmem:[#allocation2 + $0xb0] sm:$0xff]
      %v822 = vld [vmem:[#allocation2 + $0xb8] sm:$0xff]
      %v823 = vld [vmem:[#allocation2 + $0xc0] sm:$0xff]
      %v824 = vld [vmem:[#allocation2 + $0xc8] sm:$0xff]
      %v825 = vld [vmem:[#allocation2 + $0xd0] sm:$0xff]
      %v826 = vld [vmem:[#allocation2 + $0xd8] sm:$0xff]
      %v827 = vld [vmem:[#allocation2 + $0xe0] sm:$0xff]
      %v828 = vld [vmem:[#allocation2 + $0xe8] sm:$0xff]
      %v829 = vld [vmem:[#allocation2 + $0xf0] sm:$0xff]
      %v830 = vld [vmem:[#allocation2 + $0xf8] sm:$0xff]
      %v831 = vld [vmem:[#allocation2 + $0x100] sm:$0xff]
      %v832 = vld [vmem:[#allocation2 + $0x108] sm:$0xff]
      %v833 = vld [vmem:[#allocation2 + $0x110] sm:$0xff]
      %v834 = vld [vmem:[#allocation2 + $0x118] sm:$0xff]
      %v835 = vld [vmem:[#allocation2 + $0x120] sm:$0xff]
      %v836 = vld [vmem:[#allocation2 + $0x128] sm:$0xff]
      %v837 = vld [vmem:[#allocation2 + $0x130] sm:$0xff]
      %v838 = vld [vmem:[#allocation2 + $0x138] sm:$0xff]
      %v839 = vld [vmem:[#allocation2 + $0x140] sm:$0xff]
      %v840 = vld [vmem:[#allocation2 + $0x148] sm:$0xff]
      %v841 = vld [vmem:[#allocation2 + $0x150] sm:$0xff]
      %v842 = vld [vmem:[#allocation2 + $0x158] sm:$0xff]
      %v843 = vld [vmem:[#allocation2 + $0x160] sm:$0xff]
      %v844 = vld [vmem:[#allocation2 + $0x168] sm:$0xff]
      %v845 = vld [vmem:[#allocation2 + $0x170] sm:$0xff]
      %v846 = vld [vmem:[#allocation2 + $0x178] sm:$0xff]
      %v847 = vlaneseq
      %v848 = vshrl.u32 %v847, 7
      %v849 = vsub.s32 0, %v848
      %v850 = vrot.slane %v797, %v849
      %v851 = vmul.f32 %v799, %v850
      %v852 = vmul.f32 %v800, %v850
      %v853 = vmul.f32 %v801, %v850
      %v854 = vmul.f32 %v802, %v850
      %v855 = vmul.f32 %v803, %v850
      %v856 = vmul.f32 %v804, %v850
      %v857 = vmul.f32 %v805, %v850
      %v858 = vmul.f32 %v806, %v850
      %v859 = vmul.f32 %v807, %v850
      %v860 = vmul.f32 %v808, %v850
      %v861 = vmul.f32 %v809, %v850
      %v862 = vmul.f32 %v810, %v850
      %v863 = vmul.f32 %v811, %v850
      %v864 = vmul.f32 %v812, %v850
      %v865 = vmul.f32 %v813, %v850
      %v866 = vmul.f32 %v814, %v850
      %v867 = vmul.f32 %v815, %v850
      %v868 = vmul.f32 %v816, %v850
      %v869 = vmul.f32 %v817, %v850
      %v870 = vmul.f32 %v818, %v850
      %v871 = vmul.f32 %v819, %v850
      %v872 = vmul.f32 %v820, %v850
      %v873 = vmul.f32 %v821, %v850
      %v874 = vmul.f32 %v822, %v850
      %v875 = vmul.f32 %v823, %v850
      %v876 = vmul.f32 %v824, %v850
      %v877 = vmul.f32 %v825, %v850
      %v878 = vmul.f32 %v826, %v850
      %v879 = vmul.f32 %v827, %v850
      %v880 = vmul.f32 %v828, %v850
      %v881 = vmul.f32 %v829, %v850
      %v882 = vmul.f32 %v830, %v850
      %v883 = vmul.f32 %v831, %v850
      %v884 = vmul.f32 %v832, %v850
      %v885 = vmul.f32 %v833, %v850
      %v886 = vmul.f32 %v834, %v850
      %v887 = vmul.f32 %v835, %v850
      %v888 = vmul.f32 %v836, %v850
      %v889 = vmul.f32 %v837, %v850
      %v890 = vmul.f32 %v838, %v850
      %v891 = vmul.f32 %v839, %v850
      %v892 = vmul.f32 %v840, %v850
      %v893 = vmul.f32 %v841, %v850
      %v894 = vmul.f32 %v842, %v850
      %v895 = vmul.f32 %v843, %v850
      %v896 = vmul.f32 %v844, %v850
      %v897 = vmul.f32 %v845, %v850
      %v898 = vmul.f32 %v846, %v850
      %v899 = vld [vmem:[#allocation2 + $0x1] sm:$0xff]
      %v900 = vld [vmem:[#allocation2 + $0x9] sm:$0xff]
      %v901 = vld [vmem:[#allocation2 + $0x11] sm:$0xff]
      %v902 = vld [vmem:[#allocation2 + $0x19] sm:$0xff]
      %v903 = vld [vmem:[#allocation2 + $0x21] sm:$0xff]
      %v904 = vld [vmem:[#allocation2 + $0x29] sm:$0xff]
      %v905 = vld [vmem:[#allocation2 + $0x31] sm:$0xff]
      %v906 = vld [vmem:[#allocation2 + $0x39] sm:$0xff]
      %v907 = vld [vmem:[#allocation2 + $0x41] sm:$0xff]
      %v908 = vld [vmem:[#allocation2 + $0x49] sm:$0xff]
      %v909 = vld [vmem:[#allocation2 + $0x51] sm:$0xff]
      %v910 = vld [vmem:[#allocation2 + $0x59] sm:$0xff]
      %v911 = vld [vmem:[#allocation2 + $0x61] sm:$0xff]
      %v912 = vld [vmem:[#allocation2 + $0x69] sm:$0xff]
      %v913 = vld [vmem:[#allocation2 + $0x71] sm:$0xff]
      %v914 = vld [vmem:[#allocation2 + $0x79] sm:$0xff]
      %v915 = vld [vmem:[#allocation2 + $0x81] sm:$0xff]
      %v916 = vld [vmem:[#allocation2 + $0x89] sm:$0xff]
      %v917 = vld [vmem:[#allocation2 + $0x91] sm:$0xff]
      %v918 = vld [vmem:[#allocation2 + $0x99] sm:$0xff]
      %v919 = vld [vmem:[#allocation2 + $0xa1] sm:$0xff]
      %v920 = vld [vmem:[#allocation2 + $0xa9] sm:$0xff]
      %v921 = vld [vmem:[#allocation2 + $0xb1] sm:$0xff]
      %v922 = vld [vmem:[#allocation2 + $0xb9] sm:$0xff]
      %v923 = vld [vmem:[#allocation2 + $0xc1] sm:$0xff]
      %v924 = vld [vmem:[#allocation2 + $0xc9] sm:$0xff]
      %v925 = vld [vmem:[#allocation2 + $0xd1] sm:$0xff]
      %v926 = vld [vmem:[#allocation2 + $0xd9] sm:$0xff]
      %v927 = vld [vmem:[#allocation2 + $0xe1] sm:$0xff]
      %v928 = vld [vmem:[#allocation2 + $0xe9] sm:$0xff]
      %v929 = vld [vmem:[#allocation2 + $0xf1] sm:$0xff]
      %v930 = vld [vmem:[#allocation2 + $0xf9] sm:$0xff]
      %v931 = vld [vmem:[#allocation2 + $0x101] sm:$0xff]
      %v932 = vld [vmem:[#allocation2 + $0x109] sm:$0xff]
      %v933 = vld [vmem:[#allocation2 + $0x111] sm:$0xff]
      %v934 = vld [vmem:[#allocation2 + $0x119] sm:$0xff]
      %v935 = vld [vmem:[#allocation2 + $0x121] sm:$0xff]
      %v936 = vld [vmem:[#allocation2 + $0x129] sm:$0xff]
      %v937 = vld [vmem:[#allocation2 + $0x131] sm:$0xff]
      %v938 = vld [vmem:[#allocation2 + $0x139] sm:$0xff]
      %v939 = vld [vmem:[#allocation2 + $0x141] sm:$0xff]
      %v940 = vld [vmem:[#allocation2 + $0x149] sm:$0xff]
      %v941 = vld [vmem:[#allocation2 + $0x151] sm:$0xff]
      %v942 = vld [vmem:[#allocation2 + $0x159] sm:$0xff]
      %v943 = vld [vmem:[#allocation2 + $0x161] sm:$0xff]
      %v944 = vld [vmem:[#allocation2 + $0x169] sm:$0xff]
      %v945 = vld [vmem:[#allocation2 + $0x171] sm:$0xff]
      %v946 = vld [vmem:[#allocation2 + $0x179] sm:$0xff]
      %v947 = vlaneseq
      %v948 = vshrl.u32 %v947, 7
      %v949 = vsub.s32 1, %v948
      %v950 = vrot.slane %v797, %v949
      %v951 = vmul.f32 %v899, %v950
      %v952 = vmul.f32 %v900, %v950
      %v953 = vmul.f32 %v901, %v950
      %v954 = vmul.f32 %v902, %v950
      %v955 = vmul.f32 %v903, %v950
      %v956 = vmul.f32 %v904, %v950
      %v957 = vmul.f32 %v905, %v950
      %v958 = vmul.f32 %v906, %v950
      %v959 = vmul.f32 %v907, %v950
      %v960 = vmul.f32 %v908, %v950
      %v961 = vmul.f32 %v909, %v950
      %v962 = vmul.f32 %v910, %v950
      %v963 = vmul.f32 %v911, %v950
      %v964 = vmul.f32 %v912, %v950
      %v965 = vmul.f32 %v913, %v950
      %v966 = vmul.f32 %v914, %v950
      %v967 = vmul.f32 %v915, %v950
      %v968 = vmul.f32 %v916, %v950
      %v969 = vmul.f32 %v917, %v950
      %v970 = vmul.f32 %v918, %v950
      %v971 = vmul.f32 %v919, %v950
      %v972 = vmul.f32 %v920, %v950
      %v973 = vmul.f32 %v921, %v950
      %v974 = vmul.f32 %v922, %v950
      %v975 = vmul.f32 %v923, %v950
      %v976 = vmul.f32 %v924, %v950
      %v977 = vmul.f32 %v925, %v950
      %v978 = vmul.f32 %v926, %v950
      %v979 = vmul.f32 %v927, %v950
      %v980 = vmul.f32 %v928, %v950
      %v981 = vmul.f32 %v929, %v950
      %v982 = vmul.f32 %v930, %v950
      %v983 = vmul.f32 %v931, %v950
      %v984 = vmul.f32 %v932, %v950
      %v985 = vmul.f32 %v933, %v950
      %v986 = vmul.f32 %v934, %v950
      %v987 = vmul.f32 %v935, %v950
      %v988 = vmul.f32 %v936, %v950
      %v989 = vmul.f32 %v937, %v950
      %v990 = vmul.f32 %v938, %v950
      %v991 = vmul.f32 %v939, %v950
      %v992 = vmul.f32 %v940, %v950
      %v993 = vmul.f32 %v941, %v950
      %v994 = vmul.f32 %v942, %v950
      %v995 = vmul.f32 %v943, %v950
      %v996 = vmul.f32 %v944, %v950
      %v997 = vmul.f32 %v945, %v950
      %v998 = vmul.f32 %v946, %v950
      %v999 = vadd.f32 %v851, %v951
      %v1000 = vadd.f32 %v852, %v952
      %v1001 = vadd.f32 %v853, %v953
      %v1002 = vadd.f32 %v854, %v954
      %v1003 = vadd.f32 %v855, %v955
      %v1004 = vadd.f32 %v856, %v956
      %v1005 = vadd.f32 %v857, %v957
      %v1006 = vadd.f32 %v858, %v958
      %v1007 = vadd.f32 %v859, %v959
      %v1008 = vadd.f32 %v860, %v960
      %v1009 = vadd.f32 %v861, %v961
      %v1010 = vadd.f32 %v862, %v962
      %v1011 = vadd.f32 %v863, %v963
      %v1012 = vadd.f32 %v864, %v964
      %v1013 = vadd.f32 %v865, %v965
      %v1014 = vadd.f32 %v866, %v966
      %v1015 = vadd.f32 %v867, %v967
      %v1016 = vadd.f32 %v868, %v968
      %v1017 = vadd.f32 %v869, %v969
      %v1018 = vadd.f32 %v870, %v970
      %v1019 = vadd.f32 %v871, %v971
      %v1020 = vadd.f32 %v872, %v972
      %v1021 = vadd.f32 %v873, %v973
      %v1022 = vadd.f32 %v874, %v974
      %v1023 = vadd.f32 %v875, %v975
      %v1024 = vadd.f32 %v876, %v976
      %v1025 = vadd.f32 %v877, %v977
      %v1026 = vadd.f32 %v878, %v978
      %v1027 = vadd.f32 %v879, %v979
      %v1028 = vadd.f32 %v880, %v980
      %v1029 = vadd.f32 %v881, %v981
      %v1030 = vadd.f32 %v882, %v982
      %v1031 = vadd.f32 %v883, %v983
      %v1032 = vadd.f32 %v884, %v984
      %v1033 = vadd.f32 %v885, %v985
      %v1034 = vadd.f32 %v886, %v986
      %v1035 = vadd.f32 %v887, %v987
      %v1036 = vadd.f32 %v888, %v988
      %v1037 = vadd.f32 %v889, %v989
      %v1038 = vadd.f32 %v890, %v990
      %v1039 = vadd.f32 %v891, %v991
      %v1040 = vadd.f32 %v892, %v992
      %v1041 = vadd.f32 %v893, %v993
      %v1042 = vadd.f32 %v894, %v994
      %v1043 = vadd.f32 %v895, %v995
      %v1044 = vadd.f32 %v896, %v996
      %v1045 = vadd.f32 %v897, %v997
      %v1046 = vadd.f32 %v898, %v998
      %v1047 = vld [vmem:[#allocation2 + $0x2] sm:$0xff]
      %v1048 = vld [vmem:[#allocation2 + $0xa] sm:$0xff]
      %v1049 = vld [vmem:[#allocation2 + $0x12] sm:$0xff]
      %v1050 = vld [vmem:[#allocation2 + $0x1a] sm:$0xff]
      %v1051 = vld [vmem:[#allocation2 + $0x22] sm:$0xff]
      %v1052 = vld [vmem:[#allocation2 + $0x2a] sm:$0xff]
      %v1053 = vld [vmem:[#allocation2 + $0x32] sm:$0xff]
      %v1054 = vld [vmem:[#allocation2 + $0x3a] sm:$0xff]
      %v1055 = vld [vmem:[#allocation2 + $0x42] sm:$0xff]
      %v1056 = vld [vmem:[#allocation2 + $0x4a] sm:$0xff]
      %v1057 = vld [vmem:[#allocation2 + $0x52] sm:$0xff]
      %v1058 = vld [vmem:[#allocation2 + $0x5a] sm:$0xff]
      %v1059 = vld [vmem:[#allocation2 + $0x62] sm:$0xff]
      %v1060 = vld [vmem:[#allocation2 + $0x6a] sm:$0xff]
      %v1061 = vld [vmem:[#allocation2 + $0x72] sm:$0xff]
      %v1062 = vld [vmem:[#allocation2 + $0x7a] sm:$0xff]
      %v1063 = vld [vmem:[#allocation2 + $0x82] sm:$0xff]
      %v1064 = vld [vmem:[#allocation2 + $0x8a] sm:$0xff]
      %v1065 = vld [vmem:[#allocation2 + $0x92] sm:$0xff]
      %v1066 = vld [vmem:[#allocation2 + $0x9a] sm:$0xff]
      %v1067 = vld [vmem:[#allocation2 + $0xa2] sm:$0xff]
      %v1068 = vld [vmem:[#allocation2 + $0xaa] sm:$0xff]
      %v1069 = vld [vmem:[#allocation2 + $0xb2] sm:$0xff]
      %v1070 = vld [vmem:[#allocation2 + $0xba] sm:$0xff]
      %v1071 = vld [vmem:[#allocation2 + $0xc2] sm:$0xff]
      %v1072 = vld [vmem:[#allocation2 + $0xca] sm:$0xff]
      %v1073 = vld [vmem:[#allocation2 + $0xd2] sm:$0xff]
      %v1074 = vld [vmem:[#allocation2 + $0xda] sm:$0xff]
      %v1075 = vld [vmem:[#allocation2 + $0xe2] sm:$0xff]
      %v1076 = vld [vmem:[#allocation2 + $0xea] sm:$0xff]
      %v1077 = vld [vmem:[#allocation2 + $0xf2] sm:$0xff]
      %v1078 = vld [vmem:[#allocation2 + $0xfa] sm:$0xff]
      %v1079 = vld [vmem:[#allocation2 + $0x102] sm:$0xff]
      %v1080 = vld [vmem:[#allocation2 + $0x10a] sm:$0xff]
      %v1081 = vld [vmem:[#allocation2 + $0x112] sm:$0xff]
      %v1082 = vld [vmem:[#allocation2 + $0x11a] sm:$0xff]
      %v1083 = vld [vmem:[#allocation2 + $0x122] sm:$0xff]
      %v1084 = vld [vmem:[#allocation2 + $0x12a] sm:$0xff]
      %v1085 = vld [vmem:[#allocation2 + $0x132] sm:$0xff]
      %v1086 = vld [vmem:[#allocation2 + $0x13a] sm:$0xff]
      %v1087 = vld [vmem:[#allocation2 + $0x142] sm:$0xff]
      %v1088 = vld [vmem:[#allocation2 + $0x14a] sm:$0xff]
      %v1089 = vld [vmem:[#allocation2 + $0x152] sm:$0xff]
      %v1090 = vld [vmem:[#allocation2 + $0x15a] sm:$0xff]
      %v1091 = vld [vmem:[#allocation2 + $0x162] sm:$0xff]
      %v1092 = vld [vmem:[#allocation2 + $0x16a] sm:$0xff]
      %v1093 = vld [vmem:[#allocation2 + $0x172] sm:$0xff]
      %v1094 = vld [vmem:[#allocation2 + $0x17a] sm:$0xff]
      %v1095 = vlaneseq
      %v1096 = vshrl.u32 %v1095, 7
      %v1097 = vsub.s32 2, %v1096
      %v1098 = vrot.slane %v797, %v1097
      %v1099 = vmul.f32 %v1047, %v1098
      %v1100 = vmul.f32 %v1048, %v1098
      %v1101 = vmul.f32 %v1049, %v1098
      %v1102 = vmul.f32 %v1050, %v1098
      %v1103 = vmul.f32 %v1051, %v1098
      %v1104 = vmul.f32 %v1052, %v1098
      %v1105 = vmul.f32 %v1053, %v1098
      %v1106 = vmul.f32 %v1054, %v1098
      %v1107 = vmul.f32 %v1055, %v1098
      %v1108 = vmul.f32 %v1056, %v1098
      %v1109 = vmul.f32 %v1057, %v1098
      %v1110 = vmul.f32 %v1058, %v1098
      %v1111 = vmul.f32 %v1059, %v1098
      %v1112 = vmul.f32 %v1060, %v1098
      %v1113 = vmul.f32 %v1061, %v1098
      %v1114 = vmul.f32 %v1062, %v1098
      %v1115 = vmul.f32 %v1063, %v1098
      %v1116 = vmul.f32 %v1064, %v1098
      %v1117 = vmul.f32 %v1065, %v1098
      %v1118 = vmul.f32 %v1066, %v1098
      %v1119 = vmul.f32 %v1067, %v1098
      %v1120 = vmul.f32 %v1068, %v1098
      %v1121 = vmul.f32 %v1069, %v1098
      %v1122 = vmul.f32 %v1070, %v1098
      %v1123 = vmul.f32 %v1071, %v1098
      %v1124 = vmul.f32 %v1072, %v1098
      %v1125 = vmul.f32 %v1073, %v1098
      %v1126 = vmul.f32 %v1074, %v1098
      %v1127 = vmul.f32 %v1075, %v1098
      %v1128 = vmul.f32 %v1076, %v1098
      %v1129 = vmul.f32 %v1077, %v1098
      %v1130 = vmul.f32 %v1078, %v1098
      %v1131 = vmul.f32 %v1079, %v1098
      %v1132 = vmul.f32 %v1080, %v1098
      %v1133 = vmul.f32 %v1081, %v1098
      %v1134 = vmul.f32 %v1082, %v1098
      %v1135 = vmul.f32 %v1083, %v1098
      %v1136 = vmul.f32 %v1084, %v1098
      %v1137 = vmul.f32 %v1085, %v1098
      %v1138 = vmul.f32 %v1086, %v1098
      %v1139 = vmul.f32 %v1087, %v1098
      %v1140 = vmul.f32 %v1088, %v1098
      %v1141 = vmul.f32 %v1089, %v1098
      %v1142 = vmul.f32 %v1090, %v1098
      %v1143 = vmul.f32 %v1091, %v1098
      %v1144 = vmul.f32 %v1092, %v1098
      %v1145 = vmul.f32 %v1093, %v1098
      %v1146 = vmul.f32 %v1094, %v1098
      %v1147 = vadd.f32 %v999, %v1099
      %v1148 = vadd.f32 %v1000, %v1100
      %v1149 = vadd.f32 %v1001, %v1101
      %v1150 = vadd.f32 %v1002, %v1102
      %v1151 = vadd.f32 %v1003, %v1103
      %v1152 = vadd.f32 %v1004, %v1104
      %v1153 = vadd.f32 %v1005, %v1105
      %v1154 = vadd.f32 %v1006, %v1106
      %v1155 = vadd.f32 %v1007, %v1107
      %v1156 = vadd.f32 %v1008, %v1108
      %v1157 = vadd.f32 %v1009, %v1109
      %v1158 = vadd.f32 %v1010, %v1110
      %v1159 = vadd.f32 %v1011, %v1111
      %v1160 = vadd.f32 %v1012, %v1112
      %v1161 = vadd.f32 %v1013, %v1113
      %v1162 = vadd.f32 %v1014, %v1114
      %v1163 = vadd.f32 %v1015, %v1115
      %v1164 = vadd.f32 %v1016, %v1116
      %v1165 = vadd.f32 %v1017, %v1117
      %v1166 = vadd.f32 %v1018, %v1118
      %v1167 = vadd.f32 %v1019, %v1119
      %v1168 = vadd.f32 %v1020, %v1120
      %v1169 = vadd.f32 %v1021, %v1121
      %v1170 = vadd.f32 %v1022, %v1122
      %v1171 = vadd.f32 %v1023, %v1123
      %v1172 = vadd.f32 %v1024, %v1124
      %v1173 = vadd.f32 %v1025, %v1125
      %v1174 = vadd.f32 %v1026, %v1126
      %v1175 = vadd.f32 %v1027, %v1127
      %v1176 = vadd.f32 %v1028, %v1128
      %v1177 = vadd.f32 %v1029, %v1129
      %v1178 = vadd.f32 %v1030, %v1130
      %v1179 = vadd.f32 %v1031, %v1131
      %v1180 = vadd.f32 %v1032, %v1132
      %v1181 = vadd.f32 %v1033, %v1133
      %v1182 = vadd.f32 %v1034, %v1134
      %v1183 = vadd.f32 %v1035, %v1135
      %v1184 = vadd.f32 %v1036, %v1136
      %v1185 = vadd.f32 %v1037, %v1137
      %v1186 = vadd.f32 %v1038, %v1138
      %v1187 = vadd.f32 %v1039, %v1139
      %v1188 = vadd.f32 %v1040, %v1140
      %v1189 = vadd.f32 %v1041, %v1141
      %v1190 = vadd.f32 %v1042, %v1142
      %v1191 = vadd.f32 %v1043, %v1143
      %v1192 = vadd.f32 %v1044, %v1144
      %v1193 = vadd.f32 %v1045, %v1145
      %v1194 = vadd.f32 %v1046, %v1146
      %v1195 = vld [vmem:[#allocation2 + $0x180] sm:$0xff]
      %v1196 = vld [vmem:[#allocation2 + $0x188] sm:$0xff]
      %v1197 = vld [vmem:[#allocation2 + $0x190] sm:$0xff]
      %v1198 = vlaneseq
      %v1199 = vshrl.u32 %v1198, 7
      %v1200 = vsub.s32 3, %v1199
      %v1201 = vrot.slane %v797, %v1200
      %v1202 = vmul.f32 %v802, %v1201
      %v1203 = vmul.f32 %v803, %v1201
      %v1204 = vmul.f32 %v804, %v1201
      %v1205 = vmul.f32 %v805, %v1201
      %v1206 = vmul.f32 %v806, %v1201
      %v1207 = vmul.f32 %v807, %v1201
      %v1208 = vmul.f32 %v808, %v1201
      %v1209 = vmul.f32 %v809, %v1201
      %v1210 = vmul.f32 %v810, %v1201
      %v1211 = vmul.f32 %v811, %v1201
      %v1212 = vmul.f32 %v812, %v1201
      %v1213 = vmul.f32 %v813, %v1201
      %v1214 = vmul.f32 %v814, %v1201
      %v1215 = vmul.f32 %v815, %v1201
      %v1216 = vmul.f32 %v816, %v1201
      %v1217 = vmul.f32 %v817, %v1201
      %v1218 = vmul.f32 %v818, %v1201
      %v1219 = vmul.f32 %v819, %v1201
      %v1220 = vmul.f32 %v820, %v1201
      %v1221 = vmul.f32 %v821, %v1201
      %v1222 = vmul.f32 %v822, %v1201
      %v1223 = vmul.f32 %v823, %v1201
      %v1224 = vmul.f32 %v824, %v1201
      %v1225 = vmul.f32 %v825, %v1201
      %v1226 = vmul.f32 %v826, %v1201
      %v1227 = vmul.f32 %v827, %v1201
      %v1228 = vmul.f32 %v828, %v1201
      %v1229 = vmul.f32 %v829, %v1201
      %v1230 = vmul.f32 %v830, %v1201
      %v1231 = vmul.f32 %v831, %v1201
      %v1232 = vmul.f32 %v832, %v1201
      %v1233 = vmul.f32 %v833, %v1201
      %v1234 = vmul.f32 %v834, %v1201
      %v1235 = vmul.f32 %v835, %v1201
      %v1236 = vmul.f32 %v836, %v1201
      %v1237 = vmul.f32 %v837, %v1201
      %v1238 = vmul.f32 %v838, %v1201
      %v1239 = vmul.f32 %v839, %v1201
      %v1240 = vmul.f32 %v840, %v1201
      %v1241 = vmul.f32 %v841, %v1201
      %v1242 = vmul.f32 %v842, %v1201
      %v1243 = vmul.f32 %v843, %v1201
      %v1244 = vmul.f32 %v844, %v1201
      %v1245 = vmul.f32 %v845, %v1201
      %v1246 = vmul.f32 %v846, %v1201
      %v1247 = vmul.f32 %v1195, %v1201
      %v1248 = vmul.f32 %v1196, %v1201
      %v1249 = vmul.f32 %v1197, %v1201
      %v1250 = vadd.f32 %v1147, %v1202
      %v1251 = vadd.f32 %v1148, %v1203
      %v1252 = vadd.f32 %v1149, %v1204
      %v1253 = vadd.f32 %v1150, %v1205
      %v1254 = vadd.f32 %v1151, %v1206
      %v1255 = vadd.f32 %v1152, %v1207
      %v1256 = vadd.f32 %v1153, %v1208
      %v1257 = vadd.f32 %v1154, %v1209
      %v1258 = vadd.f32 %v1155, %v1210
      %v1259 = vadd.f32 %v1156, %v1211
      %v1260 = vadd.f32 %v1157, %v1212
      %v1261 = vadd.f32 %v1158, %v1213
      %v1262 = vadd.f32 %v1159, %v1214
      %v1263 = vadd.f32 %v1160, %v1215
      %v1264 = vadd.f32 %v1161, %v1216
      %v1265 = vadd.f32 %v1162, %v1217
      %v1266 = vadd.f32 %v1163, %v1218
      %v1267 = vadd.f32 %v1164, %v1219
      %v1268 = vadd.f32 %v1165, %v1220
      %v1269 = vadd.f32 %v1166, %v1221
      %v1270 = vadd.f32 %v1167, %v1222
      %v1271 = vadd.f32 %v1168, %v1223
      %v1272 = vadd.f32 %v1169, %v1224
      %v1273 = vadd.f32 %v1170, %v1225
      %v1274 = vadd.f32 %v1171, %v1226
      %v1275 = vadd.f32 %v1172, %v1227
      %v1276 = vadd.f32 %v1173, %v1228
      %v1277 = vadd.f32 %v1174, %v1229
      %v1278 = vadd.f32 %v1175, %v1230
      %v1279 = vadd.f32 %v1176, %v1231
      %v1280 = vadd.f32 %v1177, %v1232
      %v1281 = vadd.f32 %v1178, %v1233
      %v1282 = vadd.f32 %v1179, %v1234
      %v1283 = vadd.f32 %v1180, %v1235
      %v1284 = vadd.f32 %v1181, %v1236
      %v1285 = vadd.f32 %v1182, %v1237
      %v1286 = vadd.f32 %v1183, %v1238
      %v1287 = vadd.f32 %v1184, %v1239
      %v1288 = vadd.f32 %v1185, %v1240
      %v1289 = vadd.f32 %v1186, %v1241
      %v1290 = vadd.f32 %v1187, %v1242
      %v1291 = vadd.f32 %v1188, %v1243
      %v1292 = vadd.f32 %v1189, %v1244
      %v1293 = vadd.f32 %v1190, %v1245
      %v1294 = vadd.f32 %v1191, %v1246
      %v1295 = vadd.f32 %v1192, %v1247
      %v1296 = vadd.f32 %v1193, %v1248
      %v1297 = vadd.f32 %v1194, %v1249
      %v1298 = vld [vmem:[#allocation2 + $0x181] sm:$0xff]
      %v1299 = vld [vmem:[#allocation2 + $0x189] sm:$0xff]
      %v1300 = vld [vmem:[#allocation2 + $0x191] sm:$0xff]
      %v1301 = vlaneseq
      %v1302 = vshrl.u32 %v1301, 7
      %v1303 = vsub.s32 4, %v1302
      %v1304 = vrot.slane %v797, %v1303
      %v1305 = vmul.f32 %v902, %v1304
      %v1306 = vmul.f32 %v903, %v1304
      %v1307 = vmul.f32 %v904, %v1304
      %v1308 = vmul.f32 %v905, %v1304
      %v1309 = vmul.f32 %v906, %v1304
      %v1310 = vmul.f32 %v907, %v1304
      %v1311 = vmul.f32 %v908, %v1304
      %v1312 = vmul.f32 %v909, %v1304
      %v1313 = vmul.f32 %v910, %v1304
      %v1314 = vmul.f32 %v911, %v1304
      %v1315 = vmul.f32 %v912, %v1304
      %v1316 = vmul.f32 %v913, %v1304
      %v1317 = vmul.f32 %v914, %v1304
      %v1318 = vmul.f32 %v915, %v1304
      %v1319 = vmul.f32 %v916, %v1304
      %v1320 = vmul.f32 %v917, %v1304
      %v1321 = vmul.f32 %v918, %v1304
      %v1322 = vmul.f32 %v919, %v1304
      %v1323 = vmul.f32 %v920, %v1304
      %v1324 = vmul.f32 %v921, %v1304
      %v1325 = vmul.f32 %v922, %v1304
      %v1326 = vmul.f32 %v923, %v1304
      %v1327 = vmul.f32 %v924, %v1304
      %v1328 = vmul.f32 %v925, %v1304
      %v1329 = vmul.f32 %v926, %v1304
      %v1330 = vmul.f32 %v927, %v1304
      %v1331 = vmul.f32 %v928, %v1304
      %v1332 = vmul.f32 %v929, %v1304
      %v1333 = vmul.f32 %v930, %v1304
      %v1334 = vmul.f32 %v931, %v1304
      %v1335 = vmul.f32 %v932, %v1304
      %v1336 = vmul.f32 %v933, %v1304
      %v1337 = vmul.f32 %v934, %v1304
      %v1338 = vmul.f32 %v935, %v1304
      %v1339 = vmul.f32 %v936, %v1304
      %v1340 = vmul.f32 %v937, %v1304
      %v1341 = vmul.f32 %v938, %v1304
      %v1342 = vmul.f32 %v939, %v1304
      %v1343 = vmul.f32 %v940, %v1304
      %v1344 = vmul.f32 %v941, %v1304
      %v1345 = vmul.f32 %v942, %v1304
      %v1346 = vmul.f32 %v943, %v1304
      %v1347 = vmul.f32 %v944, %v1304
      %v1348 = vmul.f32 %v945, %v1304
      %v1349 = vmul.f32 %v946, %v1304
      %v1350 = vmul.f32 %v1298, %v1304
      %v1351 = vmul.f32 %v1299, %v1304
      %v1352 = vmul.f32 %v1300, %v1304
      %v1353 = vadd.f32 %v1250, %v1305
      %v1354 = vadd.f32 %v1251, %v1306
      %v1355 = vadd.f32 %v1252, %v1307
      %v1356 = vadd.f32 %v1253, %v1308
      %v1357 = vadd.f32 %v1254, %v1309
      %v1358 = vadd.f32 %v1255, %v1310
      %v1359 = vadd.f32 %v1256, %v1311
      %v1360 = vadd.f32 %v1257, %v1312
      %v1361 = vadd.f32 %v1258, %v1313
      %v1362 = vadd.f32 %v1259, %v1314
      %v1363 = vadd.f32 %v1260, %v1315
      %v1364 = vadd.f32 %v1261, %v1316
      %v1365 = vadd.f32 %v1262, %v1317
      %v1366 = vadd.f32 %v1263, %v1318
      %v1367 = vadd.f32 %v1264, %v1319
      %v1368 = vadd.f32 %v1265, %v1320
      %v1369 = vadd.f32 %v1266, %v1321
      %v1370 = vadd.f32 %v1267, %v1322
      %v1371 = vadd.f32 %v1268, %v1323
      %v1372 = vadd.f32 %v1269, %v1324
      %v1373 = vadd.f32 %v1270, %v1325
      %v1374 = vadd.f32 %v1271, %v1326
      %v1375 = vadd.f32 %v1272, %v1327
      %v1376 = vadd.f32 %v1273, %v1328
      %v1377 = vadd.f32 %v1274, %v1329
      %v1378 = vadd.f32 %v1275, %v1330
      %v1379 = vadd.f32 %v1276, %v1331
      %v1380 = vadd.f32 %v1277, %v1332
      %v1381 = vadd.f32 %v1278, %v1333
      %v1382 = vadd.f32 %v1279, %v1334
      %v1383 = vadd.f32 %v1280, %v1335
      %v1384 = vadd.f32 %v1281, %v1336
      %v1385 = vadd.f32 %v1282, %v1337
      %v1386 = vadd.f32 %v1283, %v1338
      %v1387 = vadd.f32 %v1284, %v1339
      %v1388 = vadd.f32 %v1285, %v1340
      %v1389 = vadd.f32 %v1286, %v1341
      %v1390 = vadd.f32 %v1287, %v1342
      %v1391 = vadd.f32 %v1288, %v1343
      %v1392 = vadd.f32 %v1289, %v1344
      %v1393 = vadd.f32 %v1290, %v1345
      %v1394 = vadd.f32 %v1291, %v1346
      %v1395 = vadd.f32 %v1292, %v1347
      %v1396 = vadd.f32 %v1293, %v1348
      %v1397 = vadd.f32 %v1294, %v1349
      %v1398 = vadd.f32 %v1295, %v1350
      %v1399 = vadd.f32 %v1296, %v1351
      %v1400 = vadd.f32 %v1297, %v1352
      %v1401 = vld [vmem:[#allocation2 + $0x182] sm:$0xff]
      %v1402 = vld [vmem:[#allocation2 + $0x18a] sm:$0xff]
      %v1403 = vld [vmem:[#allocation2 + $0x192] sm:$0xff]
      %v1404 = vlaneseq
      %v1405 = vshrl.u32 %v1404, 7
      %v1406 = vsub.s32 5, %v1405
      %v1407 = vrot.slane %v797, %v1406
      %v1408 = vmul.f32 %v1050, %v1407
      %v1409 = vmul.f32 %v1051, %v1407
      %v1410 = vmul.f32 %v1052, %v1407
      %v1411 = vmul.f32 %v1053, %v1407
      %v1412 = vmul.f32 %v1054, %v1407
      %v1413 = vmul.f32 %v1055, %v1407
      %v1414 = vmul.f32 %v1056, %v1407
      %v1415 = vmul.f32 %v1057, %v1407
      %v1416 = vmul.f32 %v1058, %v1407
      %v1417 = vmul.f32 %v1059, %v1407
      %v1418 = vmul.f32 %v1060, %v1407
      %v1419 = vmul.f32 %v1061, %v1407
      %v1420 = vmul.f32 %v1062, %v1407
      %v1421 = vmul.f32 %v1063, %v1407
      %v1422 = vmul.f32 %v1064, %v1407
      %v1423 = vmul.f32 %v1065, %v1407
      %v1424 = vmul.f32 %v1066, %v1407
      %v1425 = vmul.f32 %v1067, %v1407
      %v1426 = vmul.f32 %v1068, %v1407
      %v1427 = vmul.f32 %v1069, %v1407
      %v1428 = vmul.f32 %v1070, %v1407
      %v1429 = vmul.f32 %v1071, %v1407
      %v1430 = vmul.f32 %v1072, %v1407
      %v1431 = vmul.f32 %v1073, %v1407
      %v1432 = vmul.f32 %v1074, %v1407
      %v1433 = vmul.f32 %v1075, %v1407
      %v1434 = vmul.f32 %v1076, %v1407
      %v1435 = vmul.f32 %v1077, %v1407
      %v1436 = vmul.f32 %v1078, %v1407
      %v1437 = vmul.f32 %v1079, %v1407
      %v1438 = vmul.f32 %v1080, %v1407
      %v1439 = vmul.f32 %v1081, %v1407
      %v1440 = vmul.f32 %v1082, %v1407
      %v1441 = vmul.f32 %v1083, %v1407
      %v1442 = vmul.f32 %v1084, %v1407
      %v1443 = vmul.f32 %v1085, %v1407
      %v1444 = vmul.f32 %v1086, %v1407
      %v1445 = vmul.f32 %v1087, %v1407
      %v1446 = vmul.f32 %v1088, %v1407
      %v1447 = vmul.f32 %v1089, %v1407
      %v1448 = vmul.f32 %v1090, %v1407
      %v1449 = vmul.f32 %v1091, %v1407
      %v1450 = vmul.f32 %v1092, %v1407
      %v1451 = vmul.f32 %v1093, %v1407
      %v1452 = vmul.f32 %v1094, %v1407
      %v1453 = vmul.f32 %v1401, %v1407
      %v1454 = vmul.f32 %v1402, %v1407
      %v1455 = vmul.f32 %v1403, %v1407
      %v1456 = vadd.f32 %v1353, %v1408
      %v1457 = vadd.f32 %v1354, %v1409
      %v1458 = vadd.f32 %v1355, %v1410
      %v1459 = vadd.f32 %v1356, %v1411
      %v1460 = vadd.f32 %v1357, %v1412
      %v1461 = vadd.f32 %v1358, %v1413
      %v1462 = vadd.f32 %v1359, %v1414
      %v1463 = vadd.f32 %v1360, %v1415
      %v1464 = vadd.f32 %v1361, %v1416
      %v1465 = vadd.f32 %v1362, %v1417
      %v1466 = vadd.f32 %v1363, %v1418
      %v1467 = vadd.f32 %v1364, %v1419
      %v1468 = vadd.f32 %v1365, %v1420
      %v1469 = vadd.f32 %v1366, %v1421
      %v1470 = vadd.f32 %v1367, %v1422
      %v1471 = vadd.f32 %v1368, %v1423
      %v1472 = vadd.f32 %v1369, %v1424
      %v1473 = vadd.f32 %v1370, %v1425
      %v1474 = vadd.f32 %v1371, %v1426
      %v1475 = vadd.f32 %v1372, %v1427
      %v1476 = vadd.f32 %v1373, %v1428
      %v1477 = vadd.f32 %v1374, %v1429
      %v1478 = vadd.f32 %v1375, %v1430
      %v1479 = vadd.f32 %v1376, %v1431
      %v1480 = vadd.f32 %v1377, %v1432
      %v1481 = vadd.f32 %v1378, %v1433
      %v1482 = vadd.f32 %v1379, %v1434
      %v1483 = vadd.f32 %v1380, %v1435
      %v1484 = vadd.f32 %v1381, %v1436
      %v1485 = vadd.f32 %v1382, %v1437
      %v1486 = vadd.f32 %v1383, %v1438
      %v1487 = vadd.f32 %v1384, %v1439
      %v1488 = vadd.f32 %v1385, %v1440
      %v1489 = vadd.f32 %v1386, %v1441
      %v1490 = vadd.f32 %v1387, %v1442
      %v1491 = vadd.f32 %v1388, %v1443
      %v1492 = vadd.f32 %v1389, %v1444
      %v1493 = vadd.f32 %v1390, %v1445
      %v1494 = vadd.f32 %v1391, %v1446
      %v1495 = vadd.f32 %v1392, %v1447
      %v1496 = vadd.f32 %v1393, %v1448
      %v1497 = vadd.f32 %v1394, %v1449
      %v1498 = vadd.f32 %v1395, %v1450
      %v1499 = vadd.f32 %v1396, %v1451
      %v1500 = vadd.f32 %v1397, %v1452
      %v1501 = vadd.f32 %v1398, %v1453
      %v1502 = vadd.f32 %v1399, %v1454
      %v1503 = vadd.f32 %v1400, %v1455
      %v1504 = vld [vmem:[#allocation2 + $0x198] sm:$0xff]
      %v1505 = vld [vmem:[#allocation2 + $0x1a0] sm:$0xff]
      %v1506 = vld [vmem:[#allocation2 + $0x1a8] sm:$0xff]
      %v1507 = vlaneseq
      %v1508 = vshrl.u32 %v1507, 7
      %v1509 = vsub.s32 6, %v1508
      %v1510 = vrot.slane %v797, %v1509
      %v1511 = vmul.f32 %v805, %v1510
      %v1512 = vmul.f32 %v806, %v1510
      %v1513 = vmul.f32 %v807, %v1510
      %v1514 = vmul.f32 %v808, %v1510
      %v1515 = vmul.f32 %v809, %v1510
      %v1516 = vmul.f32 %v810, %v1510
      %v1517 = vmul.f32 %v811, %v1510
      %v1518 = vmul.f32 %v812, %v1510
      %v1519 = vmul.f32 %v813, %v1510
      %v1520 = vmul.f32 %v814, %v1510
      %v1521 = vmul.f32 %v815, %v1510
      %v1522 = vmul.f32 %v816, %v1510
      %v1523 = vmul.f32 %v817, %v1510
      %v1524 = vmul.f32 %v818, %v1510
      %v1525 = vmul.f32 %v819, %v1510
      %v1526 = vmul.f32 %v820, %v1510
      %v1527 = vmul.f32 %v821, %v1510
      %v1528 = vmul.f32 %v822, %v1510
      %v1529 = vmul.f32 %v823, %v1510
      %v1530 = vmul.f32 %v824, %v1510
      %v1531 = vmul.f32 %v825, %v1510
      %v1532 = vmul.f32 %v826, %v1510
      %v1533 = vmul.f32 %v827, %v1510
      %v1534 = vmul.f32 %v828, %v1510
      %v1535 = vmul.f32 %v829, %v1510
      %v1536 = vmul.f32 %v830, %v1510
      %v1537 = vmul.f32 %v831, %v1510
      %v1538 = vmul.f32 %v832, %v1510
      %v1539 = vmul.f32 %v833, %v1510
      %v1540 = vmul.f32 %v834, %v1510
      %v1541 = vmul.f32 %v835, %v1510
      %v1542 = vmul.f32 %v836, %v1510
      %v1543 = vmul.f32 %v837, %v1510
      %v1544 = vmul.f32 %v838, %v1510
      %v1545 = vmul.f32 %v839, %v1510
      %v1546 = vmul.f32 %v840, %v1510
      %v1547 = vmul.f32 %v841, %v1510
      %v1548 = vmul.f32 %v842, %v1510
      %v1549 = vmul.f32 %v843, %v1510
      %v1550 = vmul.f32 %v844, %v1510
      %v1551 = vmul.f32 %v845, %v1510
      %v1552 = vmul.f32 %v846, %v1510
      %v1553 = vmul.f32 %v1195, %v1510
      %v1554 = vmul.f32 %v1196, %v1510
      %v1555 = vmul.f32 %v1197, %v1510
      %v1556 = vmul.f32 %v1504, %v1510
      %v1557 = vmul.f32 %v1505, %v1510
      %v1558 = vmul.f32 %v1506, %v1510
      %v1559 = vadd.f32 %v1456, %v1511
      %v1560 = vadd.f32 %v1457, %v1512
      %v1561 = vadd.f32 %v1458, %v1513
      %v1562 = vadd.f32 %v1459, %v1514
      %v1563 = vadd.f32 %v1460, %v1515
      %v1564 = vadd.f32 %v1461, %v1516
      %v1565 = vadd.f32 %v1462, %v1517
      %v1566 = vadd.f32 %v1463, %v1518
      %v1567 = vadd.f32 %v1464, %v1519
      %v1568 = vadd.f32 %v1465, %v1520
      %v1569 = vadd.f32 %v1466, %v1521
      %v1570 = vadd.f32 %v1467, %v1522
      %v1571 = vadd.f32 %v1468, %v1523
      %v1572 = vadd.f32 %v1469, %v1524
      %v1573 = vadd.f32 %v1470, %v1525
      %v1574 = vadd.f32 %v1471, %v1526
      %v1575 = vadd.f32 %v1472, %v1527
      %v1576 = vadd.f32 %v1473, %v1528
      %v1577 = vadd.f32 %v1474, %v1529
      %v1578 = vadd.f32 %v1475, %v1530
      %v1579 = vadd.f32 %v1476, %v1531
      %v1580 = vadd.f32 %v1477, %v1532
      %v1581 = vadd.f32 %v1478, %v1533
      %v1582 = vadd.f32 %v1479, %v1534
      %v1583 = vadd.f32 %v1480, %v1535
      %v1584 = vadd.f32 %v1481, %v1536
      %v1585 = vadd.f32 %v1482, %v1537
      %v1586 = vadd.f32 %v1483, %v1538
      %v1587 = vadd.f32 %v1484, %v1539
      %v1588 = vadd.f32 %v1485, %v1540
      %v1589 = vadd.f32 %v1486, %v1541
      %v1590 = vadd.f32 %v1487, %v1542
      %v1591 = vadd.f32 %v1488, %v1543
      %v1592 = vadd.f32 %v1489, %v1544
      %v1593 = vadd.f32 %v1490, %v1545
      %v1594 = vadd.f32 %v1491, %v1546
      %v1595 = vadd.f32 %v1492, %v1547
      %v1596 = vadd.f32 %v1493, %v1548
      %v1597 = vadd.f32 %v1494, %v1549
      %v1598 = vadd.f32 %v1495, %v1550
      %v1599 = vadd.f32 %v1496, %v1551
      %v1600 = vadd.f32 %v1497, %v1552
      %v1601 = vadd.f32 %v1498, %v1553
      %v1602 = vadd.f32 %v1499, %v1554
      %v1603 = vadd.f32 %v1500, %v1555
      %v1604 = vadd.f32 %v1501, %v1556
      %v1605 = vadd.f32 %v1502, %v1557
      %v1606 = vadd.f32 %v1503, %v1558
      %v1607 = vld [vmem:[#allocation2 + $0x199] sm:$0xff]
      %v1608 = vld [vmem:[#allocation2 + $0x1a1] sm:$0xff]
      %v1609 = vld [vmem:[#allocation2 + $0x1a9] sm:$0xff]
      %v1610 = vlaneseq
      %v1611 = vshrl.u32 %v1610, 7
      %v1612 = vsub.s32 7, %v1611
      %v1613 = vrot.slane %v797, %v1612
      %v1614 = vmul.f32 %v905, %v1613
      %v1615 = vmul.f32 %v906, %v1613
      %v1616 = vmul.f32 %v907, %v1613
      %v1617 = vmul.f32 %v908, %v1613
      %v1618 = vmul.f32 %v909, %v1613
      %v1619 = vmul.f32 %v910, %v1613
      %v1620 = vmul.f32 %v911, %v1613
      %v1621 = vmul.f32 %v912, %v1613
      %v1622 = vmul.f32 %v913, %v1613
      %v1623 = vmul.f32 %v914, %v1613
      %v1624 = vmul.f32 %v915, %v1613
      %v1625 = vmul.f32 %v916, %v1613
      %v1626 = vmul.f32 %v917, %v1613
      %v1627 = vmul.f32 %v918, %v1613
      %v1628 = vmul.f32 %v919, %v1613
      %v1629 = vmul.f32 %v920, %v1613
      %v1630 = vmul.f32 %v921, %v1613
      %v1631 = vmul.f32 %v922, %v1613
      %v1632 = vmul.f32 %v923, %v1613
      %v1633 = vmul.f32 %v924, %v1613
      %v1634 = vmul.f32 %v925, %v1613
      %v1635 = vmul.f32 %v926, %v1613
      %v1636 = vmul.f32 %v927, %v1613
      %v1637 = vmul.f32 %v928, %v1613
      %v1638 = vmul.f32 %v929, %v1613
      %v1639 = vmul.f32 %v930, %v1613
      %v1640 = vmul.f32 %v931, %v1613
      %v1641 = vmul.f32 %v932, %v1613
      %v1642 = vmul.f32 %v933, %v1613
      %v1643 = vmul.f32 %v934, %v1613
      %v1644 = vmul.f32 %v935, %v1613
      %v1645 = vmul.f32 %v936, %v1613
      %v1646 = vmul.f32 %v937, %v1613
      %v1647 = vmul.f32 %v938, %v1613
      %v1648 = vmul.f32 %v939, %v1613
      %v1649 = vmul.f32 %v940, %v1613
      %v1650 = vmul.f32 %v941, %v1613
      %v1651 = vmul.f32 %v942, %v1613
      %v1652 = vmul.f32 %v943, %v1613
      %v1653 = vmul.f32 %v944, %v1613
      %v1654 = vmul.f32 %v945, %v1613
      %v1655 = vmul.f32 %v946, %v1613
      %v1656 = vmul.f32 %v1298, %v1613
      %v1657 = vmul.f32 %v1299, %v1613
      %v1658 = vmul.f32 %v1300, %v1613
      %v1659 = vmul.f32 %v1607, %v1613
      %v1660 = vmul.f32 %v1608, %v1613
      %v1661 = vmul.f32 %v1609, %v1613
      %v1662 = vadd.f32 %v1559, %v1614
      %v1663 = vadd.f32 %v1560, %v1615
      %v1664 = vadd.f32 %v1561, %v1616
      %v1665 = vadd.f32 %v1562, %v1617
      %v1666 = vadd.f32 %v1563, %v1618
      %v1667 = vadd.f32 %v1564, %v1619
      %v1668 = vadd.f32 %v1565, %v1620
      %v1669 = vadd.f32 %v1566, %v1621
      %v1670 = vadd.f32 %v1567, %v1622
      %v1671 = vadd.f32 %v1568, %v1623
      %v1672 = vadd.f32 %v1569, %v1624
      %v1673 = vadd.f32 %v1570, %v1625
      %v1674 = vadd.f32 %v1571, %v1626
      %v1675 = vadd.f32 %v1572, %v1627
      %v1676 = vadd.f32 %v1573, %v1628
      %v1677 = vadd.f32 %v1574, %v1629
      %v1678 = vadd.f32 %v1575, %v1630
      %v1679 = vadd.f32 %v1576, %v1631
      %v1680 = vadd.f32 %v1577, %v1632
      %v1681 = vadd.f32 %v1578, %v1633
      %v1682 = vadd.f32 %v1579, %v1634
      %v1683 = vadd.f32 %v1580, %v1635
      %v1684 = vadd.f32 %v1581, %v1636
      %v1685 = vadd.f32 %v1582, %v1637
      %v1686 = vadd.f32 %v1583, %v1638
      %v1687 = vadd.f32 %v1584, %v1639
      %v1688 = vadd.f32 %v1585, %v1640
      %v1689 = vadd.f32 %v1586, %v1641
      %v1690 = vadd.f32 %v1587, %v1642
      %v1691 = vadd.f32 %v1588, %v1643
      %v1692 = vadd.f32 %v1589, %v1644
      %v1693 = vadd.f32 %v1590, %v1645
      %v1694 = vadd.f32 %v1591, %v1646
      %v1695 = vadd.f32 %v1592, %v1647
      %v1696 = vadd.f32 %v1593, %v1648
      %v1697 = vadd.f32 %v1594, %v1649
      %v1698 = vadd.f32 %v1595, %v1650
      %v1699 = vadd.f32 %v1596, %v1651
      %v1700 = vadd.f32 %v1597, %v1652
      %v1701 = vadd.f32 %v1598, %v1653
      %v1702 = vadd.f32 %v1599, %v1654
      %v1703 = vadd.f32 %v1600, %v1655
      %v1704 = vadd.f32 %v1601, %v1656
      %v1705 = vadd.f32 %v1602, %v1657
      %v1706 = vadd.f32 %v1603, %v1658
      %v1707 = vadd.f32 %v1604, %v1659
      %v1708 = vadd.f32 %v1605, %v1660
      %v1709 = vadd.f32 %v1606, %v1661
      %v1710 = vld [vmem:[#allocation2 + $0x19a] sm:$0xff]
      %v1711 = vld [vmem:[#allocation2 + $0x1a2] sm:$0xff]
      %v1712 = vld [vmem:[#allocation2 + $0x1aa] sm:$0xff]
      %v1713 = vlaneseq
      %v1714 = vshrl.u32 %v1713, 7
      %v1715 = vsub.s32 0, %v1714
      %v1716 = vrot.slane %v798, %v1715
      %v1717 = vmul.f32 %v1053, %v1716
      %v1718 = vmul.f32 %v1054, %v1716
      %v1719 = vmul.f32 %v1055, %v1716
      %v1720 = vmul.f32 %v1056, %v1716
      %v1721 = vmul.f32 %v1057, %v1716
      %v1722 = vmul.f32 %v1058, %v1716
      %v1723 = vmul.f32 %v1059, %v1716
      %v1724 = vmul.f32 %v1060, %v1716
      %v1725 = vmul.f32 %v1061, %v1716
      %v1726 = vmul.f32 %v1062, %v1716
      %v1727 = vmul.f32 %v1063, %v1716
      %v1728 = vmul.f32 %v1064, %v1716
      %v1729 = vmul.f32 %v1065, %v1716
      %v1730 = vmul.f32 %v1066, %v1716
      %v1731 = vmul.f32 %v1067, %v1716
      %v1732 = vmul.f32 %v1068, %v1716
      %v1733 = vmul.f32 %v1069, %v1716
      %v1734 = vmul.f32 %v1070, %v1716
      %v1735 = vmul.f32 %v1071, %v1716
      %v1736 = vmul.f32 %v1072, %v1716
      %v1737 = vmul.f32 %v1073, %v1716
      %v1738 = vmul.f32 %v1074, %v1716
      %v1739 = vmul.f32 %v1075, %v1716
      %v1740 = vmul.f32 %v1076, %v1716
      %v1741 = vmul.f32 %v1077, %v1716
      %v1742 = vmul.f32 %v1078, %v1716
      %v1743 = vmul.f32 %v1079, %v1716
      %v1744 = vmul.f32 %v1080, %v1716
      %v1745 = vmul.f32 %v1081, %v1716
      %v1746 = vmul.f32 %v1082, %v1716
      %v1747 = vmul.f32 %v1083, %v1716
      %v1748 = vmul.f32 %v1084, %v1716
      %v1749 = vmul.f32 %v1085, %v1716
      %v1750 = vmul.f32 %v1086, %v1716
      %v1751 = vmul.f32 %v1087, %v1716
      %v1752 = vmul.f32 %v1088, %v1716
      %v1753 = vmul.f32 %v1089, %v1716
      %v1754 = vmul.f32 %v1090, %v1716
      %v1755 = vmul.f32 %v1091, %v1716
      %v1756 = vmul.f32 %v1092, %v1716
      %v1757 = vmul.f32 %v1093, %v1716
      %v1758 = vmul.f32 %v1094, %v1716
      %v1759 = vmul.f32 %v1401, %v1716
      %v1760 = vmul.f32 %v1402, %v1716
      %v1761 = vmul.f32 %v1403, %v1716
      %v1762 = vmul.f32 %v1710, %v1716
      %v1763 = vmul.f32 %v1711, %v1716
      %v1764 = vmul.f32 %v1712, %v1716
      %v1765 = vadd.f32 %v1662, %v1717
      %v1766 = vadd.f32 %v1663, %v1718
      %v1767 = vadd.f32 %v1664, %v1719
      %v1768 = vadd.f32 %v1665, %v1720
      %v1769 = vadd.f32 %v1666, %v1721
      %v1770 = vadd.f32 %v1667, %v1722
      %v1771 = vadd.f32 %v1668, %v1723
      %v1772 = vadd.f32 %v1669, %v1724
      %v1773 = vadd.f32 %v1670, %v1725
      %v1774 = vadd.f32 %v1671, %v1726
      %v1775 = vadd.f32 %v1672, %v1727
      %v1776 = vadd.f32 %v1673, %v1728
      %v1777 = vadd.f32 %v1674, %v1729
      %v1778 = vadd.f32 %v1675, %v1730
      %v1779 = vadd.f32 %v1676, %v1731
      %v1780 = vadd.f32 %v1677, %v1732
      %v1781 = vadd.f32 %v1678, %v1733
      %v1782 = vadd.f32 %v1679, %v1734
      %v1783 = vadd.f32 %v1680, %v1735
      %v1784 = vadd.f32 %v1681, %v1736
      %v1785 = vadd.f32 %v1682, %v1737
      %v1786 = vadd.f32 %v1683, %v1738
      %v1787 = vadd.f32 %v1684, %v1739
      %v1788 = vadd.f32 %v1685, %v1740
      %v1789 = vadd.f32 %v1686, %v1741
      %v1790 = vadd.f32 %v1687, %v1742
      %v1791 = vadd.f32 %v1688, %v1743
      %v1792 = vadd.f32 %v1689, %v1744
      %v1793 = vadd.f32 %v1690, %v1745
      %v1794 = vadd.f32 %v1691, %v1746
      %v1795 = vadd.f32 %v1692, %v1747
      %v1796 = vadd.f32 %v1693, %v1748
      %v1797 = vadd.f32 %v1694, %v1749
      %v1798 = vadd.f32 %v1695, %v1750
      %v1799 = vadd.f32 %v1696, %v1751
      %v1800 = vadd.f32 %v1697, %v1752
      %v1801 = vadd.f32 %v1698, %v1753
      %v1802 = vadd.f32 %v1699, %v1754
      %v1803 = vadd.f32 %v1700, %v1755
      %v1804 = vadd.f32 %v1701, %v1756
      %v1805 = vadd.f32 %v1702, %v1757
      %v1806 = vadd.f32 %v1703, %v1758
      %v1807 = vadd.f32 %v1704, %v1759
      %v1808 = vadd.f32 %v1705, %v1760
      %v1809 = vadd.f32 %v1706, %v1761
      %v1810 = vadd.f32 %v1707, %v1762
      %v1811 = vadd.f32 %v1708, %v1763
      %v1812 = vadd.f32 %v1709, %v1764
      %v1813 = vsub.f32 0.0, %v1765
      %v1814 = vsub.f32 0.0, %v1766
      %v1815 = vsub.f32 0.0, %v1767
      %v1816 = vsub.f32 0.0, %v1768
      %v1817 = vsub.f32 0.0, %v1769
      %v1818 = vsub.f32 0.0, %v1770
      %v1819 = vsub.f32 0.0, %v1771
      %v1820 = vsub.f32 0.0, %v1772
      %v1821 = vsub.f32 0.0, %v1773
      %v1822 = vsub.f32 0.0, %v1774
      %v1823 = vsub.f32 0.0, %v1775
      %v1824 = vsub.f32 0.0, %v1776
      %v1825 = vsub.f32 0.0, %v1777
      %v1826 = vsub.f32 0.0, %v1778
      %v1827 = vsub.f32 0.0, %v1779
      %v1828 = vsub.f32 0.0, %v1780
      %v1829 = vsub.f32 0.0, %v1781
      %v1830 = vsub.f32 0.0, %v1782
      %v1831 = vsub.f32 0.0, %v1783
      %v1832 = vsub.f32 0.0, %v1784
      %v1833 = vsub.f32 0.0, %v1785
      %v1834 = vsub.f32 0.0, %v1786
      %v1835 = vsub.f32 0.0, %v1787
      %v1836 = vsub.f32 0.0, %v1788
      %v1837 = vsub.f32 0.0, %v1789
      %v1838 = vsub.f32 0.0, %v1790
      %v1839 = vsub.f32 0.0, %v1791
      %v1840 = vsub.f32 0.0, %v1792
      %v1841 = vsub.f32 0.0, %v1793
      %v1842 = vsub.f32 0.0, %v1794
      %v1843 = vsub.f32 0.0, %v1795
      %v1844 = vsub.f32 0.0, %v1796
      %v1845 = vsub.f32 0.0, %v1797
      %v1846 = vsub.f32 0.0, %v1798
      %v1847 = vsub.f32 0.0, %v1799
      %v1848 = vsub.f32 0.0, %v1800
      %v1849 = vsub.f32 0.0, %v1801
      %v1850 = vsub.f32 0.0, %v1802
      %v1851 = vsub.f32 0.0, %v1803
      %v1852 = vsub.f32 0.0, %v1804
      %v1853 = vsub.f32 0.0, %v1805
      %v1854 = vsub.f32 0.0, %v1806
      %v1855 = vsub.f32 0.0, %v1807
      %v1856 = vsub.f32 0.0, %v1808
      %v1857 = vsub.f32 0.0, %v1809
      %v1858 = vsub.f32 0.0, %v1810
      %v1859 = vsub.f32 0.0, %v1811
      %v1860 = vsub.f32 0.0, %v1812
      %v1861 = vmul.f32 %v1813, 1.442695
      %v1862 = vpow.pop %v1861
      %v1863 = vmul.f32 %v1814, 1.442695
      %v1864 = vpow.pop %v1863
      %v1865 = vmul.f32 %v1815, 1.442695
      %v1866 = vpow.pop %v1865
      %v1867 = vmul.f32 %v1816, 1.442695
      %v1868 = vpow.pop %v1867
      %v1869 = vmul.f32 %v1817, 1.442695
      %v1870 = vpow.pop %v1869
      %v1871 = vmul.f32 %v1818, 1.442695
      %v1872 = vpow.pop %v1871
      %v1873 = vmul.f32 %v1819, 1.442695
      %v1874 = vpow.pop %v1873
      %v1875 = vmul.f32 %v1820, 1.442695
      %v1876 = vpow.pop %v1875
      %v1877 = vmul.f32 %v1821, 1.442695
      %v1878 = vpow.pop %v1877
      %v1879 = vmul.f32 %v1822, 1.442695
      %v1880 = vpow.pop %v1879
      %v1881 = vmul.f32 %v1823, 1.442695
      %v1882 = vpow.pop %v1881
      %v1883 = vmul.f32 %v1824, 1.442695
      %v1884 = vpow.pop %v1883
      %v1885 = vmul.f32 %v1825, 1.442695
      %v1886 = vpow.pop %v1885
      %v1887 = vmul.f32 %v1826, 1.442695
      %v1888 = vpow.pop %v1887
      %v1889 = vmul.f32 %v1827, 1.442695
      %v1890 = vpow.pop %v1889
      %v1891 = vmul.f32 %v1828, 1.442695
      %v1892 = vpow.pop %v1891
      %v1893 = vmul.f32 %v1829, 1.442695
      %v1894 = vpow.pop %v1893
      %v1895 = vmul.f32 %v1830, 1.442695
      %v1896 = vpow.pop %v1895
      %v1897 = vmul.f32 %v1831, 1.442695
      %v1898 = vpow.pop %v1897
      %v1899 = vmul.f32 %v1832, 1.442695
      %v1900 = vpow.pop %v1899
      %v1901 = vmul.f32 %v1833, 1.442695
      %v1902 = vpow.pop %v1901
      %v1903 = vmul.f32 %v1834, 1.442695
      %v1904 = vpow.pop %v1903
      %v1905 = vmul.f32 %v1835, 1.442695
      %v1906 = vpow.pop %v1905
      %v1907 = vmul.f32 %v1836, 1.442695
      %v1908 = vpow.pop %v1907
      %v1909 = vmul.f32 %v1837, 1.442695
      %v1910 = vpow.pop %v1909
      %v1911 = vmul.f32 %v1838, 1.442695
      %v1912 = vpow.pop %v1911
      %v1913 = vmul.f32 %v1839, 1.442695
      %v1914 = vpow.pop %v1913
      %v1915 = vmul.f32 %v1840, 1.442695
      %v1916 = vpow.pop %v1915
      %v1917 = vmul.f32 %v1841, 1.442695
      %v1918 = vpow.pop %v1917
      %v1919 = vmul.f32 %v1842, 1.442695
      %v1920 = vpow.pop %v1919
      %v1921 = vmul.f32 %v1843, 1.442695
      %v1922 = vpow.pop %v1921
      %v1923 = vmul.f32 %v1844, 1.442695
      %v1924 = vpow.pop %v1923
      %v1925 = vmul.f32 %v1845, 1.442695
      %v1926 = vpow.pop %v1925
      %v1927 = vmul.f32 %v1846, 1.442695
      %v1928 = vpow.pop %v1927
      %v1929 = vmul.f32 %v1847, 1.442695
      %v1930 = vpow.pop %v1929
      %v1931 = vmul.f32 %v1848, 1.442695
      %v1932 = vpow.pop %v1931
      %v1933 = vmul.f32 %v1849, 1.442695
      %v1934 = vpow.pop %v1933
      %v1935 = vmul.f32 %v1850, 1.442695
      %v1936 = vpow.pop %v1935
      %v1937 = vmul.f32 %v1851, 1.442695
      %v1938 = vpow.pop %v1937
      %v1939 = vmul.f32 %v1852, 1.442695
      %v1940 = vpow.pop %v1939
      %v1941 = vmul.f32 %v1853, 1.442695
      %v1942 = vpow.pop %v1941
      %v1943 = vmul.f32 %v1854, 1.442695
      %v1944 = vpow.pop %v1943
      %v1945 = vmul.f32 %v1855, 1.442695
      %v1946 = vpow.pop %v1945
      %v1947 = vmul.f32 %v1856, 1.442695
      %v1948 = vpow.pop %v1947
      %v1949 = vmul.f32 %v1857, 1.442695
      %v1950 = vpow.pop %v1949
      %v1951 = vmul.f32 %v1858, 1.442695
      %v1952 = vpow.pop %v1951
      %v1953 = vmul.f32 %v1859, 1.442695
      %v1954 = vpow.pop %v1953
      %v1955 = vmul.f32 %v1860, 1.442695
      %v1956 = vpow.pop %v1955
      %v1957 = vadd.f32 %v1862, 1.0
      %v1958 = vadd.f32 %v1864, 1.0
      %v1959 = vadd.f32 %v1866, 1.0
      %v1960 = vadd.f32 %v1868, 1.0
      %v1961 = vadd.f32 %v1870, 1.0
      %v1962 = vadd.f32 %v1872, 1.0
      %v1963 = vadd.f32 %v1874, 1.0
      %v1964 = vadd.f32 %v1876, 1.0
      %v1965 = vadd.f32 %v1878, 1.0
      %v1966 = vadd.f32 %v1880, 1.0
      %v1967 = vadd.f32 %v1882, 1.0
      %v1968 = vadd.f32 %v1884, 1.0
      %v1969 = vadd.f32 %v1886, 1.0
      %v1970 = vadd.f32 %v1888, 1.0
      %v1971 = vadd.f32 %v1890, 1.0
      %v1972 = vadd.f32 %v1892, 1.0
      %v1973 = vadd.f32 %v1894, 1.0
      %v1974 = vadd.f32 %v1896, 1.0
      %v1975 = vadd.f32 %v1898, 1.0
      %v1976 = vadd.f32 %v1900, 1.0
      %v1977 = vadd.f32 %v1902, 1.0
      %v1978 = vadd.f32 %v1904, 1.0
      %v1979 = vadd.f32 %v1906, 1.0
      %v1980 = vadd.f32 %v1908, 1.0
      %v1981 = vadd.f32 %v1910, 1.0
      %v1982 = vadd.f32 %v1912, 1.0
      %v1983 = vadd.f32 %v1914, 1.0
      %v1984 = vadd.f32 %v1916, 1.0
      %v1985 = vadd.f32 %v1918, 1.0
      %v1986 = vadd.f32 %v1920, 1.0
      %v1987 = vadd.f32 %v1922, 1.0
      %v1988 = vadd.f32 %v1924, 1.0
      %v1989 = vadd.f32 %v1926, 1.0
      %v1990 = vadd.f32 %v1928, 1.0
      %v1991 = vadd.f32 %v1930, 1.0
      %v1992 = vadd.f32 %v1932, 1.0
      %v1993 = vadd.f32 %v1934, 1.0
      %v1994 = vadd.f32 %v1936, 1.0
      %v1995 = vadd.f32 %v1938, 1.0
      %v1996 = vadd.f32 %v1940, 1.0
      %v1997 = vadd.f32 %v1942, 1.0
      %v1998 = vadd.f32 %v1944, 1.0
      %v1999 = vadd.f32 %v1946, 1.0
      %v2000 = vadd.f32 %v1948, 1.0
      %v2001 = vadd.f32 %v1950, 1.0
      %v2002 = vadd.f32 %v1952, 1.0
      %v2003 = vadd.f32 %v1954, 1.0
      %v2004 = vadd.f32 %v1956, 1.0
      %v2005 = vrcp.pop %v1957
      %v2006 = vmul.f32 1.0, %v2005
      %v2007 = vrcp.pop %v1958
      %v2008 = vmul.f32 1.0, %v2007
      %v2009 = vrcp.pop %v1959
      %v2010 = vmul.f32 1.0, %v2009
      %v2011 = vrcp.pop %v1960
      %v2012 = vmul.f32 1.0, %v2011
      %v2013 = vrcp.pop %v1961
      %v2014 = vmul.f32 1.0, %v2013
      %v2015 = vrcp.pop %v1962
      %v2016 = vmul.f32 1.0, %v2015
      %v2017 = vrcp.pop %v1963
      %v2018 = vmul.f32 1.0, %v2017
      %v2019 = vrcp.pop %v1964
      %v2020 = vmul.f32 1.0, %v2019
      %v2021 = vrcp.pop %v1965
      %v2022 = vmul.f32 1.0, %v2021
      %v2023 = vrcp.pop %v1966
      %v2024 = vmul.f32 1.0, %v2023
      %v2025 = vrcp.pop %v1967
      %v2026 = vmul.f32 1.0, %v2025
      %v2027 = vrcp.pop %v1968
      %v2028 = vmul.f32 1.0, %v2027
      %v2029 = vrcp.pop %v1969
      %v2030 = vmul.f32 1.0, %v2029
      %v2031 = vrcp.pop %v1970
      %v2032 = vmul.f32 1.0, %v2031
      %v2033 = vrcp.pop %v1971
      %v2034 = vmul.f32 1.0, %v2033
      %v2035 = vrcp.pop %v1972
      %v2036 = vmul.f32 1.0, %v2035
      %v2037 = vrcp.pop %v1973
      %v2038 = vmul.f32 1.0, %v2037
      %v2039 = vrcp.pop %v1974
      %v2040 = vmul.f32 1.0, %v2039
      %v2041 = vrcp.pop %v1975
      %v2042 = vmul.f32 1.0, %v2041
      %v2043 = vrcp.pop %v1976
      %v2044 = vmul.f32 1.0, %v2043
      %v2045 = vrcp.pop %v1977
      %v2046 = vmul.f32 1.0, %v2045
      %v2047 = vrcp.pop %v1978
      %v2048 = vmul.f32 1.0, %v2047
      %v2049 = vrcp.pop %v1979
      %v2050 = vmul.f32 1.0, %v2049
      %v2051 = vrcp.pop %v1980
      %v2052 = vmul.f32 1.0, %v2051
      %v2053 = vrcp.pop %v1981
      %v2054 = vmul.f32 1.0, %v2053
      %v2055 = vrcp.pop %v1982
      %v2056 = vmul.f32 1.0, %v2055
      %v2057 = vrcp.pop %v1983
      %v2058 = vmul.f32 1.0, %v2057
      %v2059 = vrcp.pop %v1984
      %v2060 = vmul.f32 1.0, %v2059
      %v2061 = vrcp.pop %v1985
      %v2062 = vmul.f32 1.0, %v2061
      %v2063 = vrcp.pop %v1986
      %v2064 = vmul.f32 1.0, %v2063
      %v2065 = vrcp.pop %v1987
      %v2066 = vmul.f32 1.0, %v2065
      %v2067 = vrcp.pop %v1988
      %v2068 = vmul.f32 1.0, %v2067
      %v2069 = vrcp.pop %v1989
      %v2070 = vmul.f32 1.0, %v2069
      %v2071 = vrcp.pop %v1990
      %v2072 = vmul.f32 1.0, %v2071
      %v2073 = vrcp.pop %v1991
      %v2074 = vmul.f32 1.0, %v2073
      %v2075 = vrcp.pop %v1992
      %v2076 = vmul.f32 1.0, %v2075
      %v2077 = vrcp.pop %v1993
      %v2078 = vmul.f32 1.0, %v2077
      %v2079 = vrcp.pop %v1994
      %v2080 = vmul.f32 1.0, %v2079
      %v2081 = vrcp.pop %v1995
      %v2082 = vmul.f32 1.0, %v2081
      %v2083 = vrcp.pop %v1996
      %v2084 = vmul.f32 1.0, %v2083
      %v2085 = vrcp.pop %v1997
      %v2086 = vmul.f32 1.0, %v2085
      %v2087 = vrcp.pop %v1998
      %v2088 = vmul.f32 1.0, %v2087
      %v2089 = vrcp.pop %v1999
      %v2090 = vmul.f32 1.0, %v2089
      %v2091 = vrcp.pop %v2000
      %v2092 = vmul.f32 1.0, %v2091
      %v2093 = vrcp.pop %v2001
      %v2094 = vmul.f32 1.0, %v2093
      %v2095 = vrcp.pop %v2002
      %v2096 = vmul.f32 1.0, %v2095
      %v2097 = vrcp.pop %v2003
      %v2098 = vmul.f32 1.0, %v2097
      %v2099 = vrcp.pop %v2004
      %v2100 = vmul.f32 1.0, %v2099
      %2149 = vrot.lane.b32.xlu0 %v1765, 96
      %v2150 = vpop.permute.xlu0 %2149
      %2151 = vrot.lane.b32.xlu0 %v1766, 96
      %v2152 = vpop.permute.xlu0 %2151
      %2153 = vrot.lane.b32.xlu0 %v1767, 96
      %v2154 = vpop.permute.xlu0 %2153
      %2155 = vrot.lane.b32.xlu0 %v1768, 96
      %v2156 = vpop.permute.xlu0 %2155
      %2157 = vrot.lane.b32.xlu0 %v1769, 96
      %v2158 = vpop.permute.xlu0 %2157
      %2159 = vrot.lane.b32.xlu0 %v1770, 96
      %v2160 = vpop.permute.xlu0 %2159
      %2161 = vrot.lane.b32.xlu0 %v1771, 96
      %v2162 = vpop.permute.xlu0 %2161
      %2163 = vrot.lane.b32.xlu0 %v1772, 96
      %v2164 = vpop.permute.xlu0 %2163
      %2165 = vrot.lane.b32.xlu0 %v1773, 96
      %v2166 = vpop.permute.xlu0 %2165
      %2167 = vrot.lane.b32.xlu0 %v1774, 96
      %v2168 = vpop.permute.xlu0 %2167
      %2169 = vrot.lane.b32.xlu0 %v1775, 96
      %v2170 = vpop.permute.xlu0 %2169
      %2171 = vrot.lane.b32.xlu0 %v1776, 96
      %v2172 = vpop.permute.xlu0 %2171
      %2173 = vrot.lane.b32.xlu0 %v1777, 96
      %v2174 = vpop.permute.xlu0 %2173
      %2175 = vrot.lane.b32.xlu0 %v1778, 96
      %v2176 = vpop.permute.xlu0 %2175
      %2177 = vrot.lane.b32.xlu0 %v1779, 96
      %v2178 = vpop.permute.xlu0 %2177
      %2179 = vrot.lane.b32.xlu0 %v1780, 96
      %v2180 = vpop.permute.xlu0 %2179
      %2181 = vrot.lane.b32.xlu0 %v1781, 96
      %v2182 = vpop.permute.xlu0 %2181
      %2183 = vrot.lane.b32.xlu0 %v1782, 96
      %v2184 = vpop.permute.xlu0 %2183
      %2185 = vrot.lane.b32.xlu0 %v1783, 96
      %v2186 = vpop.permute.xlu0 %2185
      %2187 = vrot.lane.b32.xlu0 %v1784, 96
      %v2188 = vpop.permute.xlu0 %2187
      %2189 = vrot.lane.b32.xlu0 %v1785, 96
      %v2190 = vpop.permute.xlu0 %2189
      %2191 = vrot.lane.b32.xlu0 %v1786, 96
      %v2192 = vpop.permute.xlu0 %2191
      %2193 = vrot.lane.b32.xlu0 %v1787, 96
      %v2194 = vpop.permute.xlu0 %2193
      %2195 = vrot.lane.b32.xlu0 %v1788, 96
      %v2196 = vpop.permute.xlu0 %2195
      %2197 = vrot.lane.b32.xlu0 %v1789, 96
      %v2198 = vpop.permute.xlu0 %2197
      %2199 = vrot.lane.b32.xlu0 %v1790, 96
      %v2200 = vpop.permute.xlu0 %2199
      %2201 = vrot.lane.b32.xlu0 %v1791, 96
      %v2202 = vpop.permute.xlu0 %2201
      %2203 = vrot.lane.b32.xlu0 %v1792, 96
      %v2204 = vpop.permute.xlu0 %2203
      %2205 = vrot.lane.b32.xlu0 %v1793, 96
      %v2206 = vpop.permute.xlu0 %2205
      %2207 = vrot.lane.b32.xlu0 %v1794, 96
      %v2208 = vpop.permute.xlu0 %2207
      %2209 = vrot.lane.b32.xlu0 %v1795, 96
      %v2210 = vpop.permute.xlu0 %2209
      %2211 = vrot.lane.b32.xlu0 %v1796, 96
      %v2212 = vpop.permute.xlu0 %2211
      %2213 = vrot.lane.b32.xlu0 %v1797, 96
      %v2214 = vpop.permute.xlu0 %2213
      %2215 = vrot.lane.b32.xlu0 %v1798, 96
      %v2216 = vpop.permute.xlu0 %2215
      %2217 = vrot.lane.b32.xlu0 %v1799, 96
      %v2218 = vpop.permute.xlu0 %2217
      %2219 = vrot.lane.b32.xlu0 %v1800, 96
      %v2220 = vpop.permute.xlu0 %2219
      %2221 = vrot.lane.b32.xlu0 %v1801, 96
      %v2222 = vpop.permute.xlu0 %2221
      %2223 = vrot.lane.b32.xlu0 %v1802, 96
      %v2224 = vpop.permute.xlu0 %2223
      %2225 = vrot.lane.b32.xlu0 %v1803, 96
      %v2226 = vpop.permute.xlu0 %2225
      %2227 = vrot.lane.b32.xlu0 %v1804, 96
      %v2228 = vpop.permute.xlu0 %2227
      %2229 = vrot.lane.b32.xlu0 %v1805, 96
      %v2230 = vpop.permute.xlu0 %2229
      %2231 = vrot.lane.b32.xlu0 %v1806, 96
      %v2232 = vpop.permute.xlu0 %2231
      %2233 = vrot.lane.b32.xlu0 %v1807, 96
      %v2234 = vpop.permute.xlu0 %2233
      %2235 = vrot.lane.b32.xlu0 %v1808, 96
      %v2236 = vpop.permute.xlu0 %2235
      %2237 = vrot.lane.b32.xlu0 %v1809, 96
      %v2238 = vpop.permute.xlu0 %2237
      %2239 = vrot.lane.b32.xlu0 %v1810, 96
      %v2240 = vpop.permute.xlu0 %2239
      %2241 = vrot.lane.b32.xlu0 %v1811, 96
      %v2242 = vpop.permute.xlu0 %2241
      %2243 = vrot.lane.b32.xlu0 %v1812, 96
      %v2244 = vpop.permute.xlu0 %2243
      %v2293 = vmul.f32 %v2006, %v2150
      %v2294 = vmul.f32 %v2008, %v2152
      %v2295 = vmul.f32 %v2010, %v2154
      %v2296 = vmul.f32 %v2012, %v2156
      %v2297 = vmul.f32 %v2014, %v2158
      %v2298 = vmul.f32 %v2016, %v2160
      %v2299 = vmul.f32 %v2018, %v2162
      %v2300 = vmul.f32 %v2020, %v2164
      %v2301 = vmul.f32 %v2022, %v2166
      %v2302 = vmul.f32 %v2024, %v2168
      %v2303 = vmul.f32 %v2026, %v2170
      %v2304 = vmul.f32 %v2028, %v2172
      %v2305 = vmul.f32 %v2030, %v2174
      %v2306 = vmul.f32 %v2032, %v2176
      %v2307 = vmul.f32 %v2034, %v2178
      %v2308 = vmul.f32 %v2036, %v2180
      %v2309 = vmul.f32 %v2038, %v2182
      %v2310 = vmul.f32 %v2040, %v2184
      %v2311 = vmul.f32 %v2042, %v2186
      %v2312 = vmul.f32 %v2044, %v2188
      %v2313 = vmul.f32 %v2046, %v2190
      %v2314 = vmul.f32 %v2048, %v2192
      %v2315 = vmul.f32 %v2050, %v2194
      %v2316 = vmul.f32 %v2052, %v2196
      %v2317 = vmul.f32 %v2054, %v2198
      %v2318 = vmul.f32 %v2056, %v2200
      %v2319 = vmul.f32 %v2058, %v2202
      %v2320 = vmul.f32 %v2060, %v2204
      %v2321 = vmul.f32 %v2062, %v2206
      %v2322 = vmul.f32 %v2064, %v2208
      %v2323 = vmul.f32 %v2066, %v2210
      %v2324 = vmul.f32 %v2068, %v2212
      %v2325 = vmul.f32 %v2070, %v2214
      %v2326 = vmul.f32 %v2072, %v2216
      %v2327 = vmul.f32 %v2074, %v2218
      %v2328 = vmul.f32 %v2076, %v2220
      %v2329 = vmul.f32 %v2078, %v2222
      %v2330 = vmul.f32 %v2080, %v2224
      %v2331 = vmul.f32 %v2082, %v2226
      %v2332 = vmul.f32 %v2084, %v2228
      %v2333 = vmul.f32 %v2086, %v2230
      %v2334 = vmul.f32 %v2088, %v2232
      %v2335 = vmul.f32 %v2090, %v2234
      %v2336 = vmul.f32 %v2092, %v2236
      %v2337 = vmul.f32 %v2094, %v2238
      %v2338 = vmul.f32 %v2096, %v2240
      %v2339 = vmul.f32 %v2098, %v2242
      %v2340 = vmul.f32 %v2100, %v2244
      %2341 = vrot.lane.b32.xlu0 %v1765, 32
      %v2342 = vpop.permute.xlu0 %2341
      %2343 = vrot.lane.b32.xlu0 %v1766, 32
      %v2344 = vpop.permute.xlu0 %2343
      %2345 = vrot.lane.b32.xlu0 %v1767, 32
      %v2346 = vpop.permute.xlu0 %2345
      %2347 = vrot.lane.b32.xlu0 %v1768, 32
      %v2348 = vpop.permute.xlu0 %2347
      %2349 = vrot.lane.b32.xlu0 %v1769, 32
      %v2350 = vpop.permute.xlu0 %2349
      %2351 = vrot.lane.b32.xlu0 %v1770, 32
      %v2352 = vpop.permute.xlu0 %2351
      %2353 = vrot.lane.b32.xlu0 %v1771, 32
      %v2354 = vpop.permute.xlu0 %2353
      %2355 = vrot.lane.b32.xlu0 %v1772, 32
      %v2356 = vpop.permute.xlu0 %2355
      %2357 = vrot.lane.b32.xlu0 %v1773, 32
      %v2358 = vpop.permute.xlu0 %2357
      %2359 = vrot.lane.b32.xlu0 %v1774, 32
      %v2360 = vpop.permute.xlu0 %2359
      %2361 = vrot.lane.b32.xlu0 %v1775, 32
      %v2362 = vpop.permute.xlu0 %2361
      %2363 = vrot.lane.b32.xlu0 %v1776, 32
      %v2364 = vpop.permute.xlu0 %2363
      %2365 = vrot.lane.b32.xlu0 %v1777, 32
      %v2366 = vpop.permute.xlu0 %2365
      %2367 = vrot.lane.b32.xlu0 %v1778, 32
      %v2368 = vpop.permute.xlu0 %2367
      %2369 = vrot.lane.b32.xlu0 %v1779, 32
      %v2370 = vpop.permute.xlu0 %2369
      %2371 = vrot.lane.b32.xlu0 %v1780, 32
      %v2372 = vpop.permute.xlu0 %2371
      %2373 = vrot.lane.b32.xlu0 %v1781, 32
      %v2374 = vpop.permute.xlu0 %2373
      %2375 = vrot.lane.b32.xlu0 %v1782, 32
      %v2376 = vpop.permute.xlu0 %2375
      %2377 = vrot.lane.b32.xlu0 %v1783, 32
      %v2378 = vpop.permute.xlu0 %2377
      %2379 = vrot.lane.b32.xlu0 %v1784, 32
      %v2380 = vpop.permute.xlu0 %2379
      %2381 = vrot.lane.b32.xlu0 %v1785, 32
      %v2382 = vpop.permute.xlu0 %2381
      %2383 = vrot.lane.b32.xlu0 %v1786, 32
      %v2384 = vpop.permute.xlu0 %2383
      %2385 = vrot.lane.b32.xlu0 %v1787, 32
      %v2386 = vpop.permute.xlu0 %2385
      %2387 = vrot.lane.b32.xlu0 %v1788, 32
      %v2388 = vpop.permute.xlu0 %2387
      %2389 = vrot.lane.b32.xlu0 %v1789, 32
      %v2390 = vpop.permute.xlu0 %2389
      %2391 = vrot.lane.b32.xlu0 %v1790, 32
      %v2392 = vpop.permute.xlu0 %2391
      %2393 = vrot.lane.b32.xlu0 %v1791, 32
      %v2394 = vpop.permute.xlu0 %2393
      %2395 = vrot.lane.b32.xlu0 %v1792, 32
      %v2396 = vpop.permute.xlu0 %2395
      %2397 = vrot.lane.b32.xlu0 %v1793, 32
      %v2398 = vpop.permute.xlu0 %2397
      %2399 = vrot.lane.b32.xlu0 %v1794, 32
      %v2400 = vpop.permute.xlu0 %2399
      %2401 = vrot.lane.b32.xlu0 %v1795, 32
      %v2402 = vpop.permute.xlu0 %2401
      %2403 = vrot.lane.b32.xlu0 %v1796, 32
      %v2404 = vpop.permute.xlu0 %2403
      %2405 = vrot.lane.b32.xlu0 %v1797, 32
      %v2406 = vpop.permute.xlu0 %2405
      %2407 = vrot.lane.b32.xlu0 %v1798, 32
      %v2408 = vpop.permute.xlu0 %2407
      %2409 = vrot.lane.b32.xlu0 %v1799, 32
      %v2410 = vpop.permute.xlu0 %2409
      %2411 = vrot.lane.b32.xlu0 %v1800, 32
      %v2412 = vpop.permute.xlu0 %2411
      %2413 = vrot.lane.b32.xlu0 %v1801, 32
      %v2414 = vpop.permute.xlu0 %2413
      %2415 = vrot.lane.b32.xlu0 %v1802, 32
      %v2416 = vpop.permute.xlu0 %2415
      %2417 = vrot.lane.b32.xlu0 %v1803, 32
      %v2418 = vpop.permute.xlu0 %2417
      %2419 = vrot.lane.b32.xlu0 %v1804, 32
      %v2420 = vpop.permute.xlu0 %2419
      %2421 = vrot.lane.b32.xlu0 %v1805, 32
      %v2422 = vpop.permute.xlu0 %2421
      %2423 = vrot.lane.b32.xlu0 %v1806, 32
      %v2424 = vpop.permute.xlu0 %2423
      %2425 = vrot.lane.b32.xlu0 %v1807, 32
      %v2426 = vpop.permute.xlu0 %2425
      %2427 = vrot.lane.b32.xlu0 %v1808, 32
      %v2428 = vpop.permute.xlu0 %2427
      %2429 = vrot.lane.b32.xlu0 %v1809, 32
      %v2430 = vpop.permute.xlu0 %2429
      %2431 = vrot.lane.b32.xlu0 %v1810, 32
      %v2432 = vpop.permute.xlu0 %2431
      %2433 = vrot.lane.b32.xlu0 %v1811, 32
      %v2434 = vpop.permute.xlu0 %2433
      %2435 = vrot.lane.b32.xlu0 %v1812, 32
      %v2436 = vpop.permute.xlu0 %2435
      %v2485 = vmul.f32 %v2006, %v2342
      %v2486 = vmul.f32 %v2008, %v2344
      %v2487 = vmul.f32 %v2010, %v2346
      %v2488 = vmul.f32 %v2012, %v2348
      %v2489 = vmul.f32 %v2014, %v2350
      %v2490 = vmul.f32 %v2016, %v2352
      %v2491 = vmul.f32 %v2018, %v2354
      %v2492 = vmul.f32 %v2020, %v2356
      %v2493 = vmul.f32 %v2022, %v2358
      %v2494 = vmul.f32 %v2024, %v2360
      %v2495 = vmul.f32 %v2026, %v2362
      %v2496 = vmul.f32 %v2028, %v2364
      %v2497 = vmul.f32 %v2030, %v2366
      %v2498 = vmul.f32 %v2032, %v2368
      %v2499 = vmul.f32 %v2034, %v2370
      %v2500 = vmul.f32 %v2036, %v2372
      %v2501 = vmul.f32 %v2038, %v2374
      %v2502 = vmul.f32 %v2040, %v2376
      %v2503 = vmul.f32 %v2042, %v2378
      %v2504 = vmul.f32 %v2044, %v2380
      %v2505 = vmul.f32 %v2046, %v2382
      %v2506 = vmul.f32 %v2048, %v2384
      %v2507 = vmul.f32 %v2050, %v2386
      %v2508 = vmul.f32 %v2052, %v2388
      %v2509 = vmul.f32 %v2054, %v2390
      %v2510 = vmul.f32 %v2056, %v2392
      %v2511 = vmul.f32 %v2058, %v2394
      %v2512 = vmul.f32 %v2060, %v2396
      %v2513 = vmul.f32 %v2062, %v2398
      %v2514 = vmul.f32 %v2064, %v2400
      %v2515 = vmul.f32 %v2066, %v2402
      %v2516 = vmul.f32 %v2068, %v2404
      %v2517 = vmul.f32 %v2070, %v2406
      %v2518 = vmul.f32 %v2072, %v2408
      %v2519 = vmul.f32 %v2074, %v2410
      %v2520 = vmul.f32 %v2076, %v2412
      %v2521 = vmul.f32 %v2078, %v2414
      %v2522 = vmul.f32 %v2080, %v2416
      %v2523 = vmul.f32 %v2082, %v2418
      %v2524 = vmul.f32 %v2084, %v2420
      %v2525 = vmul.f32 %v2086, %v2422
      %v2526 = vmul.f32 %v2088, %v2424
      %v2527 = vmul.f32 %v2090, %v2426
      %v2528 = vmul.f32 %v2092, %v2428
      %v2529 = vmul.f32 %v2094, %v2430
      %v2530 = vmul.f32 %v2096, %v2432
      %v2531 = vmul.f32 %v2098, %v2434
      %v2532 = vmul.f32 %v2100, %v2436
      %vm2533 = vcmask 261120
      %v2534 = vsel %vm2533, %v2293, %v2485
      %v2535 = vsel %vm2533, %v2294, %v2486
      %v2536 = vsel %vm2533, %v2295, %v2487
      %v2537 = vsel %vm2533, %v2296, %v2488
      %v2538 = vsel %vm2533, %v2297, %v2489
      %v2539 = vsel %vm2533, %v2298, %v2490
      %v2540 = vsel %vm2533, %v2299, %v2491
      %v2541 = vsel %vm2533, %v2300, %v2492
      %v2542 = vsel %vm2533, %v2301, %v2493
      %v2543 = vsel %vm2533, %v2302, %v2494
      %v2544 = vsel %vm2533, %v2303, %v2495
      %v2545 = vsel %vm2533, %v2304, %v2496
      %v2546 = vsel %vm2533, %v2305, %v2497
      %v2547 = vsel %vm2533, %v2306, %v2498
      %v2548 = vsel %vm2533, %v2307, %v2499
      %v2549 = vsel %vm2533, %v2308, %v2500
      %v2550 = vsel %vm2533, %v2309, %v2501
      %v2551 = vsel %vm2533, %v2310, %v2502
      %v2552 = vsel %vm2533, %v2311, %v2503
      %v2553 = vsel %vm2533, %v2312, %v2504
      %v2554 = vsel %vm2533, %v2313, %v2505
      %v2555 = vsel %vm2533, %v2314, %v2506
      %v2556 = vsel %vm2533, %v2315, %v2507
      %v2557 = vsel %vm2533, %v2316, %v2508
      %v2558 = vsel %vm2533, %v2317, %v2509
      %v2559 = vsel %vm2533, %v2318, %v2510
      %v2560 = vsel %vm2533, %v2319, %v2511
      %v2561 = vsel %vm2533, %v2320, %v2512
      %v2562 = vsel %vm2533, %v2321, %v2513
      %v2563 = vsel %vm2533, %v2322, %v2514
      %v2564 = vsel %vm2533, %v2323, %v2515
      %v2565 = vsel %vm2533, %v2324, %v2516
      %v2566 = vsel %vm2533, %v2325, %v2517
      %v2567 = vsel %vm2533, %v2326, %v2518
      %v2568 = vsel %vm2533, %v2327, %v2519
      %v2569 = vsel %vm2533, %v2328, %v2520
      %v2570 = vsel %vm2533, %v2329, %v2521
      %v2571 = vsel %vm2533, %v2330, %v2522
      %v2572 = vsel %vm2533, %v2331, %v2523
      %v2573 = vsel %vm2533, %v2332, %v2524
      %v2574 = vsel %vm2533, %v2333, %v2525
      %v2575 = vsel %vm2533, %v2334, %v2526
      %v2576 = vsel %vm2533, %v2335, %v2527
      %v2577 = vsel %vm2533, %v2336, %v2528
      %v2578 = vsel %vm2533, %v2337, %v2529
      %v2579 = vsel %vm2533, %v2338, %v2530
      %v2580 = vsel %vm2533, %v2339, %v2531
      %v2581 = vsel %vm2533, %v2340, %v2532
      %v2582 = vpack.c.bf16 %v2535, %v2534
      %v2583 = vpack.c.bf16 %v2537, %v2536
      %v2584 = vpack.c.bf16 %v2539, %v2538
      %v2585 = vpack.c.bf16 %v2541, %v2540
      %v2586 = vpack.c.bf16 %v2543, %v2542
      %v2587 = vpack.c.bf16 %v2545, %v2544
      %v2588 = vpack.c.bf16 %v2547, %v2546
      %v2589 = vpack.c.bf16 %v2549, %v2548
      %v2590 = vpack.c.bf16 %v2551, %v2550
      %v2591 = vpack.c.bf16 %v2553, %v2552
      %v2592 = vpack.c.bf16 %v2555, %v2554
      %v2593 = vpack.c.bf16 %v2557, %v2556
      %v2594 = vpack.c.bf16 %v2559, %v2558
      %v2595 = vpack.c.bf16 %v2561, %v2560
      %v2596 = vpack.c.bf16 %v2563, %v2562
      %v2597 = vpack.c.bf16 %v2565, %v2564
      %v2598 = vpack.c.bf16 %v2567, %v2566
      %v2599 = vpack.c.bf16 %v2569, %v2568
      %v2600 = vpack.c.bf16 %v2571, %v2570
      %v2601 = vpack.c.bf16 %v2573, %v2572
      %v2602 = vpack.c.bf16 %v2575, %v2574
      %v2603 = vpack.c.bf16 %v2577, %v2576
      %v2604 = vpack.c.bf16 %v2579, %v2578
      %v2605 = vpack.c.bf16 %v2581, %v2580
      %v2606 = vld [vmem:[%s3] sm:$0xf]
      %v2607 = vld [vmem:[%s3 + $0x4] sm:$0xf]
      %v2608 = vld [vmem:[%s3 + $0x8] sm:$0xf]
      %v2609 = vld [vmem:[%s3 + $0xc] sm:$0xf]
      %v2610 = vld [vmem:[%s3 + $0x10] sm:$0xf]
      %v2611 = vld [vmem:[%s3 + $0x14] sm:$0xf]
      %v2612 = vld [vmem:[%s3 + $0x18] sm:$0xf]
      %v2613 = vld [vmem:[%s3 + $0x1c] sm:$0xf]
      %v2622 = vunpack.c.l.b16 %v2606
      %v2623 = vunpack.c.l.b16 %v2607
      %v2624 = vunpack.c.l.b16 %v2608
      %v2625 = vunpack.c.l.b16 %v2609
      %v2626 = vunpack.c.l.b16 %v2610
      %v2627 = vunpack.c.l.b16 %v2611
      %v2628 = vunpack.c.l.b16 %v2612
      %v2629 = vunpack.c.l.b16 %v2613
      %v2630 = vpack.c.b16 %v2623, %v2622
      %v2631 = vpack.c.b16 %v2625, %v2624
      %v2632 = vpack.c.b16 %v2627, %v2626
      %v2633 = vpack.c.b16 %v2629, %v2628
      %v2639 = vsel %vm741, %v2582, 0
      %v2642 = vsel %vm741, %v2583, 0
      %v2645 = vsel %vm741, %v2584, 0
      %v2648 = vsel %vm741, %v2585, 0
      %v2651 = vsel %vm741, %v2586, 0
      %v2654 = vsel %vm741, %v2587, 0
      %v2657 = vsel %vm741, %v2588, 0
      %v2660 = vsel %vm741, %v2589, 0
      %v2663 = vsel %vm741, %v2590, 0
      %v2666 = vsel %vm741, %v2591, 0
      %v2669 = vsel %vm741, %v2592, 0
      %v2672 = vsel %vm741, %v2593, 0
      %v2675 = vsel %vm741, %v2594, 0
      %v2678 = vsel %vm741, %v2595, 0
      %v2681 = vsel %vm741, %v2596, 0
      %v2684 = vsel %vm741, %v2597, 0
      %v2687 = vsel %vm741, %v2598, 0
      %v2690 = vsel %vm741, %v2599, 0
      %v2693 = vsel %vm741, %v2600, 0
      %v2696 = vsel %vm741, %v2601, 0
      %v2699 = vsel %vm741, %v2602, 0
      %v2702 = vsel %vm741, %v2603, 0
      %v2705 = vsel %vm741, %v2604, 0
      %v2708 = vsel %vm741, %v2605, 0
      %2710 = vmatprep.subr.bf16.mxu0 0
      %2711 = vmatpush1.bf16.msra.mxu0 %v2630
      %2712 = vmatprep.subr.bf16.mxu0 0
      %2713 = vmatpush1.bf16.msra.mxu0 %v2631
      %2714 = vmatprep.subr.bf16.mxu0 0
      %2715 = vmatpush1.bf16.msra.mxu0 %v2632
      %2716 = vmatprep.subr.bf16.mxu0 0
      %2717 = vmatpush1.bf16.msra.mxu0 %v2633
      %2718 = vmatprep.subr.bf16.mxu0 0
      %2719 = vmatpush1.bf16.msra.mxu0 0
      %2720 = vmatprep.subr.bf16.mxu0 0
      %2721 = vmatpush1.bf16.msra.mxu0 0
      %2722 = vmatprep.subr.bf16.mxu0 0
      %2723 = vmatpush1.bf16.msra.mxu0 0
      %2724 = vmatprep.subr.bf16.mxu0 0
      %2725 = vmatpush1.bf16.msra.mxu0 0
      %2726 = vmatprep.subr.bf16.mxu0 0
      %2727 = vmatpush1.bf16.msra.mxu0 0
      %2728 = vmatprep.subr.bf16.mxu0 0
      %2729 = vmatpush1.bf16.msra.mxu0 0
      %2730 = vmatprep.subr.bf16.mxu0 0
      %2731 = vmatpush1.bf16.msra.mxu0 0
      %2732 = vmatprep.subr.bf16.mxu0 0
      %2733 = vmatpush1.bf16.msra.mxu0 0
      %2734 = vmatprep.subr.bf16.mxu0 0
      %2735 = vmatpush1.bf16.msra.mxu0 0
      %2736 = vmatprep.subr.bf16.mxu0 0
      %2737 = vmatpush1.bf16.msra.mxu0 0
      %2738 = vmatprep.subr.bf16.mxu0 0
      %2739 = vmatpush1.bf16.msra.mxu0 0
      %2740 = vmatprep.subr.bf16.mxu0 0
      %2741 = vmatpush1.bf16.msra.mxu0 0
      %2742 = vmatprep.mubr.bf16.mxu0 0
      %2743 = vmatmul.mubr.bf16.gmra.mrb[0].mxu0 %v2639
      %v2744 = vpop.f32.mrb[0].mxu0
      %v2745 = vadd.f32 0.0, %v2744
      %v2746 = vpop.f32.mrb[0].mxu0
      %v2747 = vpop.f32.mrb[0].mxu0
      %v2748 = vadd.f32 0.0, %v2747
      %v2749 = vpop.f32.mrb[0].mxu0
      %2750 = vmatprep.mubr.bf16.mxu0 0
      %2751 = vmatmul.mubr.bf16.gmra.mrb[0].mxu0 %v2642
      %v2752 = vpop.f32.mrb[0].mxu0
      %v2753 = vadd.f32 0.0, %v2752
      %v2754 = vpop.f32.mrb[0].mxu0
      %v2755 = vpop.f32.mrb[0].mxu0
      %v2756 = vadd.f32 0.0, %v2755
      %v2757 = vpop.f32.mrb[0].mxu0
      %2758 = vmatprep.mubr.bf16.mxu0 0
      %2759 = vmatmul.mubr.bf16.gmra.mrb[0].mxu0 %v2645
      %v2760 = vpop.f32.mrb[0].mxu0
      %v2761 = vadd.f32 0.0, %v2760
      %v2762 = vpop.f32.mrb[0].mxu0
      %v2763 = vpop.f32.mrb[0].mxu0
      %v2764 = vadd.f32 0.0, %v2763
      %v2765 = vpop.f32.mrb[0].mxu0
      %2766 = vmatprep.mubr.bf16.mxu0 0
      %2767 = vmatmul.mubr.bf16.gmra.mrb[0].mxu0 %v2648
      %v2768 = vpop.f32.mrb[0].mxu0
      %v2769 = vadd.f32 0.0, %v2768
      %v2770 = vpop.f32.mrb[0].mxu0
      %v2771 = vpop.f32.mrb[0].mxu0
      %v2772 = vadd.f32 0.0, %v2771
      %v2773 = vpop.f32.mrb[0].mxu0
      %2774 = vmatprep.mubr.bf16.mxu0 0
      %2775 = vmatmul.mubr.bf16.gmra.mrb[0].mxu0 %v2651
      %v2776 = vpop.f32.mrb[0].mxu0
      %v2777 = vadd.f32 0.0, %v2776
      %v2778 = vpop.f32.mrb[0].mxu0
      %v2779 = vpop.f32.mrb[0].mxu0
      %v2780 = vadd.f32 0.0, %v2779
      %v2781 = vpop.f32.mrb[0].mxu0
      %2782 = vmatprep.mubr.bf16.mxu0 0
      %2783 = vmatmul.mubr.bf16.gmra.mrb[0].mxu0 %v2654
      %v2784 = vpop.f32.mrb[0].mxu0
      %v2785 = vadd.f32 0.0, %v2784
      %v2786 = vpop.f32.mrb[0].mxu0
      %v2787 = vpop.f32.mrb[0].mxu0
      %v2788 = vadd.f32 0.0, %v2787
      %v2789 = vpop.f32.mrb[0].mxu0
      %2790 = vmatprep.mubr.bf16.mxu0 0
      %2791 = vmatmul.mubr.bf16.gmra.mrb[0].mxu0 %v2657
      %v2792 = vpop.f32.mrb[0].mxu0
      %v2793 = vadd.f32 0.0, %v2792
      %v2794 = vpop.f32.mrb[0].mxu0
      %v2795 = vpop.f32.mrb[0].mxu0
      %v2796 = vadd.f32 0.0, %v2795
      %v2797 = vpop.f32.mrb[0].mxu0
      %2798 = vmatprep.mubr.bf16.mxu0 0
      %2799 = vmatmul.mubr.bf16.gmra.mrb[0].mxu0 %v2660
      %v2800 = vpop.f32.mrb[0].mxu0
      %v2801 = vadd.f32 0.0, %v2800
      %v2802 = vpop.f32.mrb[0].mxu0
      %v2803 = vpop.f32.mrb[0].mxu0
      %v2804 = vadd.f32 0.0, %v2803
      %v2805 = vpop.f32.mrb[0].mxu0
      %2806 = vmatprep.mubr.bf16.mxu0 0
      %2807 = vmatmul.mubr.bf16.gmra.mrb[0].mxu0 %v2663
      %v2808 = vpop.f32.mrb[0].mxu0
      %v2809 = vadd.f32 0.0, %v2808
      %v2810 = vpop.f32.mrb[0].mxu0
      %v2811 = vpop.f32.mrb[0].mxu0
      %v2812 = vadd.f32 0.0, %v2811
      %v2813 = vpop.f32.mrb[0].mxu0
      %2814 = vmatprep.mubr.bf16.mxu0 0
      %2815 = vmatmul.mubr.bf16.gmra.mrb[0].mxu0 %v2666
      %v2816 = vpop.f32.mrb[0].mxu0
      %v2817 = vadd.f32 0.0, %v2816
      %v2818 = vpop.f32.mrb[0].mxu0
      %v2819 = vpop.f32.mrb[0].mxu0
      %v2820 = vadd.f32 0.0, %v2819
      %v2821 = vpop.f32.mrb[0].mxu0
      %2822 = vmatprep.mubr.bf16.mxu0 0
      %2823 = vmatmul.mubr.bf16.gmra.mrb[0].mxu0 %v2669
      %v2824 = vpop.f32.mrb[0].mxu0
      %v2825 = vadd.f32 0.0, %v2824
      %v2826 = vpop.f32.mrb[0].mxu0
      %v2827 = vpop.f32.mrb[0].mxu0
      %v2828 = vadd.f32 0.0, %v2827
      %v2829 = vpop.f32.mrb[0].mxu0
      %2830 = vmatprep.mubr.bf16.mxu0 0
      %2831 = vmatmul.mubr.bf16.gmra.mrb[0].mxu0 %v2672
      %v2832 = vpop.f32.mrb[0].mxu0
      %v2833 = vadd.f32 0.0, %v2832
      %v2834 = vpop.f32.mrb[0].mxu0
      %v2835 = vpop.f32.mrb[0].mxu0
      %v2836 = vadd.f32 0.0, %v2835
      %v2837 = vpop.f32.mrb[0].mxu0
      %2838 = vmatprep.mubr.bf16.mxu0 0
      %2839 = vmatmul.mubr.bf16.gmra.mrb[0].mxu0 %v2675
      %v2840 = vpop.f32.mrb[0].mxu0
      %v2841 = vadd.f32 0.0, %v2840
      %v2842 = vpop.f32.mrb[0].mxu0
      %v2843 = vpop.f32.mrb[0].mxu0
      %v2844 = vadd.f32 0.0, %v2843
      %v2845 = vpop.f32.mrb[0].mxu0
      %2846 = vmatprep.mubr.bf16.mxu0 0
      %2847 = vmatmul.mubr.bf16.gmra.mrb[0].mxu0 %v2678
      %v2848 = vpop.f32.mrb[0].mxu0
      %v2849 = vadd.f32 0.0, %v2848
      %v2850 = vpop.f32.mrb[0].mxu0
      %v2851 = vpop.f32.mrb[0].mxu0
      %v2852 = vadd.f32 0.0, %v2851
      %v2853 = vpop.f32.mrb[0].mxu0
      %2854 = vmatprep.mubr.bf16.mxu0 0
      %2855 = vmatmul.mubr.bf16.gmra.mrb[0].mxu0 %v2681
      %v2856 = vpop.f32.mrb[0].mxu0
      %v2857 = vadd.f32 0.0, %v2856
      %v2858 = vpop.f32.mrb[0].mxu0
      %v2859 = vpop.f32.mrb[0].mxu0
      %v2860 = vadd.f32 0.0, %v2859
      %v2861 = vpop.f32.mrb[0].mxu0
      %2862 = vmatprep.mubr.bf16.mxu0 0
      %2863 = vmatmul.mubr.bf16.gmra.mrb[0].mxu0 %v2684
      %v2864 = vpop.f32.mrb[0].mxu0
      %v2865 = vadd.f32 0.0, %v2864
      %v2866 = vpop.f32.mrb[0].mxu0
      %v2867 = vpop.f32.mrb[0].mxu0
      %v2868 = vadd.f32 0.0, %v2867
      %v2869 = vpop.f32.mrb[0].mxu0
      %2870 = vmatprep.mubr.bf16.mxu0 0
      %2871 = vmatmul.mubr.bf16.gmra.mrb[0].mxu0 %v2687
      %v2872 = vpop.f32.mrb[0].mxu0
      %v2873 = vadd.f32 0.0, %v2872
      %v2874 = vpop.f32.mrb[0].mxu0
      %v2875 = vpop.f32.mrb[0].mxu0
      %v2876 = vadd.f32 0.0, %v2875
      %v2877 = vpop.f32.mrb[0].mxu0
      %2878 = vmatprep.mubr.bf16.mxu0 0
      %2879 = vmatmul.mubr.bf16.gmra.mrb[0].mxu0 %v2690
      %v2880 = vpop.f32.mrb[0].mxu0
      %v2881 = vadd.f32 0.0, %v2880
      %v2882 = vpop.f32.mrb[0].mxu0
      %v2883 = vpop.f32.mrb[0].mxu0
      %v2884 = vadd.f32 0.0, %v2883
      %v2885 = vpop.f32.mrb[0].mxu0
      %2886 = vmatprep.mubr.bf16.mxu0 0
      %2887 = vmatmul.mubr.bf16.gmra.mrb[0].mxu0 %v2693
      %v2888 = vpop.f32.mrb[0].mxu0
      %v2889 = vadd.f32 0.0, %v2888
      %v2890 = vpop.f32.mrb[0].mxu0
      %v2891 = vpop.f32.mrb[0].mxu0
      %v2892 = vadd.f32 0.0, %v2891
      %v2893 = vpop.f32.mrb[0].mxu0
      %2894 = vmatprep.mubr.bf16.mxu0 0
      %2895 = vmatmul.mubr.bf16.gmra.mrb[0].mxu0 %v2696
      %v2896 = vpop.f32.mrb[0].mxu0
      %v2897 = vadd.f32 0.0, %v2896
      %v2898 = vpop.f32.mrb[0].mxu0
      %v2899 = vpop.f32.mrb[0].mxu0
      %v2900 = vadd.f32 0.0, %v2899
      %v2901 = vpop.f32.mrb[0].mxu0
      %2902 = vmatprep.mubr.bf16.mxu0 0
      %2903 = vmatmul.mubr.bf16.gmra.mrb[0].mxu0 %v2699
      %v2904 = vpop.f32.mrb[0].mxu0
      %v2905 = vadd.f32 0.0, %v2904
      %v2906 = vpop.f32.mrb[0].mxu0
      %v2907 = vpop.f32.mrb[0].mxu0
      %v2908 = vadd.f32 0.0, %v2907
      %v2909 = vpop.f32.mrb[0].mxu0
      %2910 = vmatprep.mubr.bf16.mxu0 0
      %2911 = vmatmul.mubr.bf16.gmra.mrb[0].mxu0 %v2702
      %v2912 = vpop.f32.mrb[0].mxu0
      %v2913 = vadd.f32 0.0, %v2912
      %v2914 = vpop.f32.mrb[0].mxu0
      %v2915 = vpop.f32.mrb[0].mxu0
      %v2916 = vadd.f32 0.0, %v2915
      %v2917 = vpop.f32.mrb[0].mxu0
      %2918 = vmatprep.mubr.bf16.mxu0 0
      %2919 = vmatmul.mubr.bf16.gmra.mrb[0].mxu0 %v2705
      %v2920 = vpop.f32.mrb[0].mxu0
      %v2921 = vadd.f32 0.0, %v2920
      %v2922 = vpop.f32.mrb[0].mxu0
      %v2923 = vpop.f32.mrb[0].mxu0
      %v2924 = vadd.f32 0.0, %v2923
      %v2925 = vpop.f32.mrb[0].mxu0
      %2926 = vmatprep.mubr.bf16.mxu0 0
      %2927 = vmatmul.mubr.bf16.gmra.mrb[0].mxu0 %v2708
      %v2928 = vpop.f32.mrb[0].mxu0
      %v2929 = vadd.f32 0.0, %v2928
      %v2930 = vpop.f32.mrb[0].mxu0
      %v2931 = vpop.f32.mrb[0].mxu0
      %v2932 = vadd.f32 0.0, %v2931
      %v2933 = vpop.f32.mrb[0].mxu0
      %2934 = vdwg.mxu0
      %2935 = vst.msk [vmem:[%s197] sm:$0xff] %vm400, %v2745
      %2936 = vst.msk [vmem:[%s197 + $0x8] sm:$0xff] %vm400, %v2748
      %2937 = vst.msk [vmem:[%s197 + $0x10] sm:$0xff] %vm400, %v2753
      %2938 = vst.msk [vmem:[%s197 + $0x18] sm:$0xff] %vm400, %v2756
      %2939 = vst.msk [vmem:[%s197 + $0x20] sm:$0xff] %vm400, %v2761
      %2940 = vst.msk [vmem:[%s197 + $0x28] sm:$0xff] %vm400, %v2764
      %2941 = vst.msk [vmem:[%s197 + $0x30] sm:$0xff] %vm400, %v2769
      %2942 = vst.msk [vmem:[%s197 + $0x38] sm:$0xff] %vm400, %v2772
      %2943 = vst.msk [vmem:[%s197 + $0x40] sm:$0xff] %vm400, %v2777
      %2944 = vst.msk [vmem:[%s197 + $0x48] sm:$0xff] %vm400, %v2780
      %2945 = vst.msk [vmem:[%s197 + $0x50] sm:$0xff] %vm400, %v2785
      %2946 = vst.msk [vmem:[%s197 + $0x58] sm:$0xff] %vm400, %v2788
      %2947 = vst.msk [vmem:[%s197 + $0x60] sm:$0xff] %vm400, %v2793
      %2948 = vst.msk [vmem:[%s197 + $0x68] sm:$0xff] %vm400, %v2796
      %2949 = vst.msk [vmem:[%s197 + $0x70] sm:$0xff] %vm400, %v2801
      %2950 = vst.msk [vmem:[%s197 + $0x78] sm:$0xff] %vm400, %v2804
      %2951 = vst.msk [vmem:[%s197 + $0x80] sm:$0xff] %vm400, %v2809
      %2952 = vst.msk [vmem:[%s197 + $0x88] sm:$0xff] %vm400, %v2812
      %2953 = vst.msk [vmem:[%s197 + $0x90] sm:$0xff] %vm400, %v2817
      %2954 = vst.msk [vmem:[%s197 + $0x98] sm:$0xff] %vm400, %v2820
      %2955 = vst.msk [vmem:[%s197 + $0xa0] sm:$0xff] %vm400, %v2825
      %2956 = vst.msk [vmem:[%s197 + $0xa8] sm:$0xff] %vm400, %v2828
      %2957 = vst.msk [vmem:[%s197 + $0xb0] sm:$0xff] %vm400, %v2833
      %2958 = vst.msk [vmem:[%s197 + $0xb8] sm:$0xff] %vm400, %v2836
      %2959 = vst.msk [vmem:[%s197 + $0xc0] sm:$0xff] %vm400, %v2841
      %2960 = vst.msk [vmem:[%s197 + $0xc8] sm:$0xff] %vm400, %v2844
      %2961 = vst.msk [vmem:[%s197 + $0xd0] sm:$0xff] %vm400, %v2849
      %2962 = vst.msk [vmem:[%s197 + $0xd8] sm:$0xff] %vm400, %v2852
      %2963 = vst.msk [vmem:[%s197 + $0xe0] sm:$0xff] %vm400, %v2857
      %2964 = vst.msk [vmem:[%s197 + $0xe8] sm:$0xff] %vm400, %v2860
      %2965 = vst.msk [vmem:[%s197 + $0xf0] sm:$0xff] %vm400, %v2865
      %2966 = vst.msk [vmem:[%s197 + $0xf8] sm:$0xff] %vm400, %v2868
      %2967 = vst.msk [vmem:[%s197 + $0x100] sm:$0xff] %vm400, %v2873
      %2968 = vst.msk [vmem:[%s197 + $0x108] sm:$0xff] %vm400, %v2876
      %2969 = vst.msk [vmem:[%s197 + $0x110] sm:$0xff] %vm400, %v2881
      %2970 = vst.msk [vmem:[%s197 + $0x118] sm:$0xff] %vm400, %v2884
      %2971 = vst.msk [vmem:[%s197 + $0x120] sm:$0xff] %vm400, %v2889
      %2972 = vst.msk [vmem:[%s197 + $0x128] sm:$0xff] %vm400, %v2892
      %2973 = vst.msk [vmem:[%s197 + $0x130] sm:$0xff] %vm400, %v2897
      %2974 = vst.msk [vmem:[%s197 + $0x138] sm:$0xff] %vm400, %v2900
      %2975 = vst.msk [vmem:[%s197 + $0x140] sm:$0xff] %vm400, %v2905
      %2976 = vst.msk [vmem:[%s197 + $0x148] sm:$0xff] %vm400, %v2908
      %2977 = vst.msk [vmem:[%s197 + $0x150] sm:$0xff] %vm400, %v2913
      %2978 = vst.msk [vmem:[%s197 + $0x158] sm:$0xff] %vm400, %v2916
      %2979 = vst.msk [vmem:[%s197 + $0x160] sm:$0xff] %vm400, %v2921
      %2980 = vst.msk [vmem:[%s197 + $0x168] sm:$0xff] %vm400, %v2924
      %2981 = vst.msk [vmem:[%s197 + $0x170] sm:$0xff] %vm400, %v2929
      %2982 = vst.msk [vmem:[%s197 + $0x178] sm:$0xff] %vm400, %v2932
      %p2983 = scmp.lt.s32.totalorder %s15, 1
      %s2984 = scalar_select %p2983, %s15, 1
      %s2985 = smul.addr %s2984, 48
      %s2986 = smul.addr %s2985, 8
      %s2987 = scalar_lea.vmem %s4, %s2986
      // Predicated region
      $region37: #{tpu_custom_call.1} parent=35 // pred_check
        %p2988 = pneg %p122
      $region38: #{tpu_custom_call.1} parent=35 // pred_check_branch
        %2990 = sbr.rel (%p2988) target = $region40
      $region39: #{tpu_custom_call.1} parent=35 // pred_region
        _
      $region40: #{tpu_custom_call.1} parent=35 // pred_fallthru
        _
    $region36: #{tpu_custom_call.1} parent=5 // pred_fallthru
      _
    %p2991 = scmp.le.s32.totalorder 2, %s10
    // Predicated region
    $region41: #{tpu_custom_call.1} parent=5 // pred_check
      %p2992 = pneg %p2991
    $region42: #{tpu_custom_call.1} parent=5 // pred_check_branch
      %2994 = sbr.rel (%p2992) target = $region44
    $region43: #{tpu_custom_call.1} parent=5 // pred_region
      %s2995 = ssub.s32 %s10, 2
      // Predicated region
      $region45: #{tpu_custom_call.1} parent=43 // pred_check
        %p2996 = pneg %p128
      $region46: #{tpu_custom_call.1} parent=43 // pred_check_branch
        %2998 = sbr.rel (%p2996) target = $region48
      $region47: #{tpu_custom_call.1} parent=43 // pred_region
        %p2999 = scmp.lt.s32.totalorder %s16, 1
        %s3000 = scalar_select %p2999, %s16, 1
        %s3001 = smul.addr %s3000, 48
        %s3002 = smul.addr %s3001, 8
        %s3003 = scalar_lea.vmem %s4, %s3002
      $region48: #{tpu_custom_call.1} parent=43 // pred_fallthru
        _
    $region44: #{tpu_custom_call.1} parent=5 // pred_fallthru
      _
  $region6: #{tpu_custom_call.1} parent=0 // loop_footer
    %s14 = sadd.s32 1, %s10
  $region7: #{tpu_custom_call.1} parent=0 // loop_footer_branch
    %9 = sbr.rel target = $region3
  $region8: #{tpu_custom_call.1} parent=0 // loop_exit
    _

</llo_original>
